<compile_context>
chip_gen: v5e
topology: v5e:2x2
jax: 0.10.0
libtpu: 0.0.40
codegen_flags: <defaults>
</compile_context>

<pallas_src>
import functools

import jax
import jax.numpy as jnp
from jax.experimental import pallas as pl
from jax.experimental.pallas import tpu as pltpu


# ------------------------------------------------------------------ fused kernel
def _beats_fused_kernel(
    x_ref, p1_ref, p2_ref,
    ws_ref, bs_ref,
    winc_ref, binc_ref,
    wg12_ref, bg12_ref,
    wd1_ref, bd1_ref,
    wbc2_ref, bbc2_ref,
    wfc2_ref, bfc2_ref,
    bc_ref, fc_ref,
    *, T, N, t_out, C, out_dim, seq_len, end_dim, cdt, eps,
):
    f32 = jnp.float32
    x = x_ref[0]                                     # [T, N, C_in]
    c_in = x.shape[-1]

    # ---- start_conv: 1x1 conv over channels --------------------------------------
    h = (
        jnp.dot(x.reshape(T * N, c_in).astype(cdt), ws_ref[...],
                preferred_element_type=f32)
        + bs_ref[...]
    )                                                # [T*N, C]  (f32)
    h3 = h.reshape(T, N, C)

    # ---- dilated_inception (filter & gate fused, single K = 7*C contraction) -----
    # tap m <-> input time offset m (dilation = 1); output length t_out = T - 6.
    xcat = jnp.concatenate([h3[m:m + t_out] for m in range(7)], axis=-1)   # [t_out, N, 7C]
    xcat = xcat.reshape(t_out * N, 7 * C).astype(cdt)
    fg = jnp.dot(xcat, winc_ref[...], preferred_element_type=f32) + binc_ref[...]
    g = jnp.tanh(fg[:, :C]) * jax.nn.sigmoid(fg[:, C:])                    # [t_out*N, C]
    # TODO(synk): F.dropout(x, 0.3) (PyTorch default training=True) is RNG-dependent;
    # treated as identity here.

    # ---- CGP graph propagation: `steps` Euler steps collapsed into precomputed P^k
    g3 = g.reshape(t_out, N, C).astype(cdt)
    p1b = jnp.broadcast_to(p1_ref[...][None], (t_out, N, N))
    p2b = jnp.broadcast_to(p2_ref[...][None], (t_out, N, N))
    h1 = jnp.einsum("tmn,tnc->tmc", p1b, g3, preferred_element_type=f32)   # adj path
    h2 = jnp.einsum("tmn,tnc->tmc", p2b, g3, preferred_element_type=f32)   # adj.T path

    # ---- gconv1 + gconv2 output 1x1 convs fused into one K=2C dot -----------------
    h12 = jnp.concatenate(
        [h1.reshape(t_out * N, C), h2.reshape(t_out * N, C)], axis=-1
    ).astype(cdt)                                    # [t_out*N, 2C]
    y = jnp.dot(h12, wg12_ref[...], preferred_element_type=f32) + bg12_ref[...]

    # ---- keep last out_dim time steps (pad + [..., -out_dim:] collapses to a slice)
    y3 = y.reshape(t_out, N, C)[t_out - out_dim:]    # [out_dim, N, C]

    # ---- layer_norm over all non-batch dims, eps=1e-5, no affine ------------------
    yl = y3.reshape(out_dim * N, C)
    cnt = float(out_dim * N * C)
    mu = jnp.sum(jnp.sum(yl, axis=-1, keepdims=True), axis=0, keepdims=True) / cnt
    d = yl - mu
    var = jnp.sum(jnp.sum(d * d, axis=-1, keepdims=True), axis=0, keepdims=True) / cnt
    yn = (d * jax.lax.rsqrt(var + eps)).astype(cdt)  # [out_dim*N, C]

    # ---- backcast / forecast decoders: shared fused first matmul (2*end lanes) ----
    hd = jnp.dot(yn, wd1_ref[...], preferred_element_type=f32) + bd1_ref[...]
    hd = jnp.maximum(hd, 0.0).astype(cdt)            # [out_dim*N, 2*end_dim]
    bc = jnp.dot(hd[:, :end_dim], wbc2_ref[...], preferred_element_type=f32) + bbc2_ref[...]
    fc = jnp.dot(hd[:, end_dim:], wfc2_ref[...], preferred_element_type=f32) + bfc2_ref[...]

    bc_ref[0] = bc.reshape(out_dim, N, seq_len).astype(bc_ref.dtype)
    fc_ref[0] = fc.reshape(out_dim, N, seq_len).astype(fc_ref.dtype)


# ------------------------------------------------------------------ host-side glue
def _normalize_adj(a):
    n = a.shape[0]
    a = a + jnp.eye(n, dtype=a.dtype)
    return a / jnp.sum(a, axis=1, keepdims=True)


def _prop_matrix(adj, steps, coef):
    """Collapse `steps` Euler steps of h <- h + coef*(A_norm h - h) into P^steps (NxN)."""
    n = adj.shape[0]
    p = (1.0 - coef) * jnp.eye(n, dtype=jnp.float32) + coef * _normalize_adj(
        adj.astype(jnp.float32))
    m = jnp.eye(n, dtype=jnp.float32)
    for _ in range(int(steps)):
        m = m @ p
    return m


def pack_params(params, cdt):
    """Build kernel-ready fused operands (weights pre-cast to the MXU compute dtype)."""
    C = params["g1_w"].shape[0]
    winc = jnp.concatenate([params["wf"], params["wg"]], axis=-1)       # [7, C, 2C]
    return dict(
        ws=params["start_w"].astype(cdt),
        bs=params["start_b"],
        winc=winc.reshape(7 * C, 2 * C).astype(cdt),                    # rows: (tap, c_in)
        binc=jnp.concatenate([params["bf"], params["bg"]], axis=-1),
        wg12=jnp.concatenate([params["g1_w"], params["g2_w"]], axis=0).astype(cdt),
        bg12=params["g1_b"] + params["g2_b"],
        wd1=jnp.concatenate([params["bc_w1"], params["fc_w1"]], axis=1).astype(cdt),
        bd1=jnp.concatenate([params["bc_b1"], params["fc_b1"]], axis=1),
        wbc2=params["bc_w2"].astype(cdt),
        bbc2=params["bc_b2"],
        wfc2=params["fc_w2"].astype(cdt),
        bfc2=params["fc_b2"],
    )


def beats_block_forward(x, adj, params, cfg):
    B, c_in, N, _ = x.shape
    rf = cfg["receptive_field"]
    out_dim = cfg["out_dim"]
    seq_len = cfg["seq_len"]
    C = cfg["conv_dim"]
    end_dim = cfg["end_dim"]
    cdt = cfg["compute_dtype"]

    # pad (left, time axis) up to the receptive field, then take the last rf steps
    # (STBlock consumes x[..., -receptive_field:]; start_conv is 1x1 so commuting the
    # slice before it is exact).
    if seq_len < rf:
        x = jnp.pad(x, ((0, 0), (0, 0), (0, 0), (rf - seq_len, 0)))
    x = x[..., -rf:]
    T = rf
    t_out = T - 6                 # dilation-1 inception output length (kernel-7 branch)
    assert out_dim <= t_out, "zero padding would leak into the output slice"

    # time-major / channel-last per-batch layout: [B, T, N, C_in]
    xk = jnp.transpose(x, (0, 3, 2, 1))

    p1 = _prop_matrix(adj, cfg["cgp_steps"], cfg["cgp_coef"]).astype(cdt)
    p2 = _prop_matrix(adj.T, cfg["cgp_steps"], cfg["cgp_coef"]).astype(cdt)
    fp = pack_params(params, cdt)

    operands = (
        xk, p1, p2,
        fp["ws"], fp["bs"], fp["winc"], fp["binc"],
        fp["wg12"], fp["bg12"], fp["wd1"], fp["bd1"],
        fp["wbc2"], fp["bbc2"], fp["wfc2"], fp["bfc2"],
    )

    def _rep2d(a):
        return pl.BlockSpec(a.shape, lambda b: (0, 0))

    in_specs = [pl.BlockSpec((1, T, N, c_in), lambda b: (b, 0, 0, 0))] + [
        _rep2d(a) for a in operands[1:]
    ]
    out_shape = (
        jax.ShapeDtypeStruct((B, out_dim, N, seq_len), jnp.float32),
        jax.ShapeDtypeStruct((B, out_dim, N, seq_len), jnp.float32),
    )
    out_specs = (
        pl.BlockSpec((1, out_dim, N, seq_len), lambda b: (b, 0, 0, 0)),
        pl.BlockSpec((1, out_dim, N, seq_len), lambda b: (b, 0, 0, 0)),
    )

    kern = functools.partial(
        _beats_fused_kernel,
        T=T, N=N, t_out=t_out, C=C, out_dim=out_dim,
        seq_len=seq_len, end_dim=end_dim, cdt=cdt, eps=1e-5,
    )
    bc_raw, fc_raw = pl.pallas_call(
        kern,
        grid=(B,),
        in_specs=in_specs,
        out_specs=out_specs,
        out_shape=out_shape,
        compiler_params=pltpu.CompilerParams(
            dimension_semantics=("parallel",),     # batches shard over v7x's 2 TCs
            vmem_limit_bytes=32 * 1024 * 1024,
        ),
    )(*operands)

    # [B, out_dim(time), N, seq_len(channels)] -> NCHW [B, seq_len, N, out_dim]
    def _to_nchw(o):
        return jnp.transpose(o, (0, 3, 2, 1))

    return _to_nchw(bc_raw), _to_nchw(fc_raw)


# ------------------------------------------------------------------ params
def init_params(key, in_dim, conv_dim, end_dim, seq_len):
    kernel_set = (2, 3, 6, 7)
    c_br = conv_dim // len(kernel_set)
    keys = iter(jax.random.split(key, 64))

    def nrm(shape, scale=0.1):
        return jax.random.normal(next(keys), shape, jnp.float32) * scale

    params = {}
    params["start_w"] = nrm((in_dim, conv_dim))
    params["start_b"] = nrm((1, conv_dim))

    def build_inception():
        # per-branch torch Conv2d weights [c_br, c_in, 1, k] folded into a combined
        # tap-indexed weight W[m, c_in, c_out_total] (tap m == time offset m after
        # truncating every branch to the kernel-7 output length).
        w_comb = jnp.zeros((7, conv_dim, conv_dim), jnp.float32)
        biases = []
        for i, k in enumerate(kernel_set):
            w_k = nrm((c_br, conv_dim, k))
            b_k = nrm((c_br,))
            for j in range(k):
                m = 7 - k + j
                w_comb = w_comb.at[m, :, i * c_br:(i + 1) * c_br].set(w_k[:, :, j].T)
            biases.append(b_k)
        return w_comb, jnp.concatenate(biases).reshape(1, conv_dim)

    params["wf"], params["bf"] = build_inception()   # inception_1 (filter)
    params["wg"], params["bg"] = build_inception()   # inception_2 (gate)

    for name in ("g1", "g2"):                        # CGPBlock output 1x1 mlps
        params[f"{name}_w"] = nrm((conv_dim, conv_dim))
        params[f"{name}_b"] = nrm((1, conv_dim))
    for name in ("bc", "fc"):                        # backcast / forecast decoders
        params[f"{name}_w1"] = nrm((conv_dim, end_dim))
        params[f"{name}_b1"] = nrm((1, end_dim))
        params[f"{name}_w2"] = nrm((end_dim, seq_len))
        params[f"{name}_b2"] = nrm((1, seq_len))
    return params


# ------------------------------------------------------------------ main
if __name__ == "__main__":
    B, N = 2, 8
    in_dim, out_dim, seq_len = 4, 4, 8
    time_1, step_size_1 = 1.0, 0.5     # nfe = 2 -> receptive_field = 2*6 + 4 = 16
    time_2, step_size_2 = 1.0, 0.25    # CGP Euler integration: 4 steps
    conv_dim, end_dim = 32, 64

    nfe = round(time_1 / step_size_1)
    receptive_field = nfe * (7 - 1) + out_dim

    cfg = dict(
        receptive_field=receptive_field,
        out_dim=out_dim,
        seq_len=seq_len,
        conv_dim=conv_dim,
        end_dim=end_dim,
        cgp_steps=int(round(time_2 / step_size_2)),
        cgp_coef=float(step_size_2) * 0.5 * 2.0,   # step * 0.5 * alpha (alpha = 2.0)
        compute_dtype=jnp.bfloat16,                 # MXU operands; accumulation in f32
    )

    key = jax.random.PRNGKey(0)
    kp, kx, ka = jax.random.split(key, 3)
    params = init_params(kp, in_dim, conv_dim, end_dim, seq_len)
    x = jax.random.normal(kx, (B, in_dim, N, seq_len), jnp.float32)
    adj = jax.nn.softmax(jax.random.normal(ka, (N, N), jnp.float32), axis=-1)

    fwd = jax.jit(functools.partial(beats_block_forward, cfg=cfg))
    backcast, forecast = fwd(x, adj, params)
    jax.block_until_ready((backcast, forecast))

    assert backcast.shape == (B, seq_len, N, out_dim), backcast.shape
    assert forecast.shape == (B, seq_len, N, out_dim), forecast.shape
    assert bool(jnp.all(jnp.isfinite(backcast))) and bool(jnp.all(jnp.isfinite(forecast)))
    print("KERNEL_OK")
</pallas_src>

<mosaic_0001>
module attributes {stable_mosaic.version = 11 : i64} {
  func.func @_beats_fused_kernel(%arg0: i32, %arg1: memref<1x16x8x4xf32, #tpu.memory_space<vmem>>, %arg2: memref<8x8xbf16, #tpu.memory_space<vmem>>, %arg3: memref<8x8xbf16, #tpu.memory_space<vmem>>, %arg4: memref<4x32xbf16, #tpu.memory_space<vmem>>, %arg5: memref<1x32xf32, #tpu.memory_space<vmem>>, %arg6: memref<224x64xbf16, #tpu.memory_space<vmem>>, %arg7: memref<1x64xf32, #tpu.memory_space<vmem>>, %arg8: memref<64x32xbf16, #tpu.memory_space<vmem>>, %arg9: memref<1x32xf32, #tpu.memory_space<vmem>>, %arg10: memref<32x128xbf16, #tpu.memory_space<vmem>>, %arg11: memref<1x128xf32, #tpu.memory_space<vmem>>, %arg12: memref<64x8xbf16, #tpu.memory_space<vmem>>, %arg13: memref<1x8xf32, #tpu.memory_space<vmem>>, %arg14: memref<64x8xbf16, #tpu.memory_space<vmem>>, %arg15: memref<1x8xf32, #tpu.memory_space<vmem>>, %arg16: memref<1x4x8x8xf32, #tpu.memory_space<vmem>>, %arg17: memref<1x4x8x8xf32, #tpu.memory_space<vmem>>) attributes {dimension_semantics = [#tpu.dimension_semantics<parallel>], iteration_bounds = array<i64: 2>, scalar_prefetch = 0 : i64, scratch_operands = 0 : i64, tpu.core_type = #tpu.core_type<tc>, window_params = [{transform_indices = @transform_0, window_bounds = array<i64: 1, 16, 8, 4>}, {pipeline_mode = #tpu.pipeline_mode<synchronous>, transform_indices = @transform_1, window_bounds = array<i64: 8, 8>}, {pipeline_mode = #tpu.pipeline_mode<synchronous>, transform_indices = @transform_2, window_bounds = array<i64: 8, 8>}, {pipeline_mode = #tpu.pipeline_mode<synchronous>, transform_indices = @transform_3, window_bounds = array<i64: 4, 32>}, {pipeline_mode = #tpu.pipeline_mode<synchronous>, transform_indices = @transform_4, window_bounds = array<i64: 1, 32>}, {pipeline_mode = #tpu.pipeline_mode<synchronous>, transform_indices = @transform_5, window_bounds = array<i64: 224, 64>}, {pipeline_mode = #tpu.pipeline_mode<synchronous>, transform_indices = @transform_6, window_bounds = array<i64: 1, 64>}, {pipeline_mode = #tpu.pipeline_mode<synchronous>, transform_indices = @transform_7, window_bounds = array<i64: 64, 32>}, {pipeline_mode = #tpu.pipeline_mode<synchronous>, transform_indices = @transform_8, window_bounds = array<i64: 1, 32>}, {pipeline_mode = #tpu.pipeline_mode<synchronous>, transform_indices = @transform_9, window_bounds = array<i64: 32, 128>}, {pipeline_mode = #tpu.pipeline_mode<synchronous>, transform_indices = @transform_10, window_bounds = array<i64: 1, 128>}, {pipeline_mode = #tpu.pipeline_mode<synchronous>, transform_indices = @transform_11, window_bounds = array<i64: 64, 8>}, {pipeline_mode = #tpu.pipeline_mode<synchronous>, transform_indices = @transform_12, window_bounds = array<i64: 1, 8>}, {pipeline_mode = #tpu.pipeline_mode<synchronous>, transform_indices = @transform_13, window_bounds = array<i64: 64, 8>}, {pipeline_mode = #tpu.pipeline_mode<synchronous>, transform_indices = @transform_14, window_bounds = array<i64: 1, 8>}, {transform_indices = @transform_15, window_bounds = array<i64: 1, 4, 8, 8>}, {transform_indices = @transform_16, window_bounds = array<i64: 1, 4, 8, 8>}]} {
    %c0 = arith.constant 0 : index
    %c0_0 = arith.constant 0 : index
    %c0_1 = arith.constant 0 : index
    %c0_2 = arith.constant 0 : index
    %0 = vector.load %arg1[%c0, %c0_0, %c0_1, %c0_2] : memref<1x16x8x4xf32, #tpu.memory_space<vmem>>, vector<1x16x8x4xf32>
    %1 = vector.shape_cast %0 : vector<1x16x8x4xf32> to vector<16x8x4xf32>
    %2 = vector.shape_cast %1 : vector<16x8x4xf32> to vector<128x4xf32>
    %3 = arith.truncf %2 : vector<128x4xf32> to vector<128x4xbf16>
    %c0_3 = arith.constant 0 : index
    %c0_4 = arith.constant 0 : index
    %4 = vector.load %arg4[%c0_3, %c0_4] : memref<4x32xbf16, #tpu.memory_space<vmem>>, vector<4x32xbf16>
    %cst = arith.constant dense<0.000000e+00> : vector<128x32xf32>
    %5 = tpu.matmul %3, %4, %cst {dimension_numbers = #tpu.dot_dimension_numbers<[1], [0], [0], [1], [0, 0, 1, 1], [], []>} : vector<128x4xbf16>, vector<4x32xbf16>, vector<128x32xf32> -> vector<128x32xf32>
    %c0_5 = arith.constant 0 : index
    %c0_6 = arith.constant 0 : index
    %6 = vector.load %arg5[%c0_5, %c0_6] : memref<1x32xf32, #tpu.memory_space<vmem>>, vector<1x32xf32>
    %7 = vector.broadcast %6 : vector<1x32xf32> to vector<128x32xf32>
    %8 = arith.addf %5, %7 : vector<128x32xf32>
    %9 = vector.shape_cast %8 : vector<128x32xf32> to vector<16x8x32xf32>
    %10 = vector.extract_strided_slice %9 {offsets = [0, 0, 0], sizes = [10, 8, 32], strides = [1, 1, 1]} : vector<16x8x32xf32> to vector<10x8x32xf32>
    %11 = vector.extract_strided_slice %9 {offsets = [1, 0, 0], sizes = [10, 8, 32], strides = [1, 1, 1]} : vector<16x8x32xf32> to vector<10x8x32xf32>
    %12 = vector.extract_strided_slice %9 {offsets = [2, 0, 0], sizes = [10, 8, 32], strides = [1, 1, 1]} : vector<16x8x32xf32> to vector<10x8x32xf32>
    %13 = vector.extract_strided_slice %9 {offsets = [3, 0, 0], sizes = [10, 8, 32], strides = [1, 1, 1]} : vector<16x8x32xf32> to vector<10x8x32xf32>
    %14 = vector.extract_strided_slice %9 {offsets = [4, 0, 0], sizes = [10, 8, 32], strides = [1, 1, 1]} : vector<16x8x32xf32> to vector<10x8x32xf32>
    %15 = vector.extract_strided_slice %9 {offsets = [5, 0, 0], sizes = [10, 8, 32], strides = [1, 1, 1]} : vector<16x8x32xf32> to vector<10x8x32xf32>
    %16 = vector.extract_strided_slice %9 {offsets = [6, 0, 0], sizes = [10, 8, 32], strides = [1, 1, 1]} : vector<16x8x32xf32> to vector<10x8x32xf32>
    %17 = tpu.concatenate %10, %11, %12, %13, %14, %15, %16 in 2 : vector<10x8x32xf32>, vector<10x8x32xf32>, vector<10x8x32xf32>, vector<10x8x32xf32>, vector<10x8x32xf32>, vector<10x8x32xf32>, vector<10x8x32xf32> -> vector<10x8x224xf32>
    %18 = vector.shape_cast %17 : vector<10x8x224xf32> to vector<80x224xf32>
    %19 = arith.truncf %18 : vector<80x224xf32> to vector<80x224xbf16>
    %c0_7 = arith.constant 0 : index
    %c0_8 = arith.constant 0 : index
    %20 = vector.load %arg6[%c0_7, %c0_8] : memref<224x64xbf16, #tpu.memory_space<vmem>>, vector<224x64xbf16>
    %cst_9 = arith.constant dense<0.000000e+00> : vector<80x64xf32>
    %21 = tpu.matmul %19, %20, %cst_9 {dimension_numbers = #tpu.dot_dimension_numbers<[1], [0], [0], [1], [0, 0, 1, 1], [], []>} : vector<80x224xbf16>, vector<224x64xbf16>, vector<80x64xf32> -> vector<80x64xf32>
    %c0_10 = arith.constant 0 : index
    %c0_11 = arith.constant 0 : index
    %22 = vector.load %arg7[%c0_10, %c0_11] : memref<1x64xf32, #tpu.memory_space<vmem>>, vector<1x64xf32>
    %23 = vector.broadcast %22 : vector<1x64xf32> to vector<80x64xf32>
    %24 = arith.addf %21, %23 : vector<80x64xf32>
    %25 = vector.extract_strided_slice %24 {offsets = [0, 0], sizes = [80, 32], strides = [1, 1]} : vector<80x64xf32> to vector<80x32xf32>
    %26 = math.tanh %25 : vector<80x32xf32>
    %27 = vector.extract_strided_slice %24 {offsets = [0, 32], sizes = [80, 32], strides = [1, 1]} : vector<80x64xf32> to vector<80x32xf32>
    %28 = arith.negf %27 : vector<80x32xf32>
    %29 = math.exp %28 : vector<80x32xf32>
    %cst_12 = arith.constant 1.000000e+00 : f32
    %30 = vector.broadcast %cst_12 : f32 to vector<80x32xf32>
    %31 = arith.addf %30, %29 : vector<80x32xf32>
    %32 = arith.divf %30, %31 : vector<80x32xf32>
    %33 = arith.mulf %26, %32 : vector<80x32xf32>
    %34 = vector.shape_cast %33 : vector<80x32xf32> to vector<10x8x32xf32>
    %35 = arith.truncf %34 : vector<10x8x32xf32> to vector<10x8x32xbf16>
    %c0_13 = arith.constant 0 : index
    %c0_14 = arith.constant 0 : index
    %36 = vector.load %arg2[%c0_13, %c0_14] : memref<8x8xbf16, #tpu.memory_space<vmem>>, vector<8x8xbf16>
    %37 = vector.shape_cast %36 : vector<8x8xbf16> to vector<1x8x8xbf16>
    %38 = vector.shape_cast %37 : vector<1x8x8xbf16> to vector<1x8x8xbf16>
    %39 = vector.broadcast %38 : vector<1x8x8xbf16> to vector<10x8x8xbf16>
    %c0_15 = arith.constant 0 : index
    %c0_16 = arith.constant 0 : index
    %40 = vector.load %arg3[%c0_15, %c0_16] : memref<8x8xbf16, #tpu.memory_space<vmem>>, vector<8x8xbf16>
    %41 = vector.shape_cast %40 : vector<8x8xbf16> to vector<1x8x8xbf16>
    %42 = vector.shape_cast %41 : vector<1x8x8xbf16> to vector<1x8x8xbf16>
    %43 = vector.broadcast %42 : vector<1x8x8xbf16> to vector<10x8x8xbf16>
    "tpu.trace_start"() <{level = 10 : i32, message = "tmn,tnc->tmc"}> : () -> ()
    %cst_17 = arith.constant dense<0.000000e+00> : vector<10x8x32xf32>
    %44 = tpu.matmul %39, %35, %cst_17 {dimension_numbers = #tpu.dot_dimension_numbers<[2], [1], [1], [2], [0, 0, 0, 1, 1, 2], [0], [0]>} : vector<10x8x8xbf16>, vector<10x8x32xbf16>, vector<10x8x32xf32> -> vector<10x8x32xf32>
    %cst_18 = arith.constant dense<0.000000e+00> : vector<10x8x32xf32>
    %45 = tpu.matmul %43, %35, %cst_18 {dimension_numbers = #tpu.dot_dimension_numbers<[2], [1], [1], [2], [0, 0, 0, 1, 1, 2], [0], [0]>} : vector<10x8x8xbf16>, vector<10x8x32xbf16>, vector<10x8x32xf32> -> vector<10x8x32xf32>
    "tpu.trace_stop"() : () -> ()
    %46 = vector.shape_cast %44 : vector<10x8x32xf32> to vector<80x32xf32>
    %47 = vector.shape_cast %45 : vector<10x8x32xf32> to vector<80x32xf32>
    %48 = tpu.concatenate %46, %47 in 1 : vector<80x32xf32>, vector<80x32xf32> -> vector<80x64xf32>
    %49 = arith.truncf %48 : vector<80x64xf32> to vector<80x64xbf16>
    %c0_19 = arith.constant 0 : index
    %c0_20 = arith.constant 0 : index
    %50 = vector.load %arg8[%c0_19, %c0_20] : memref<64x32xbf16, #tpu.memory_space<vmem>>, vector<64x32xbf16>
    %cst_21 = arith.constant dense<0.000000e+00> : vector<80x32xf32>
    %51 = tpu.matmul %49, %50, %cst_21 {dimension_numbers = #tpu.dot_dimension_numbers<[1], [0], [0], [1], [0, 0, 1, 1], [], []>} : vector<80x64xbf16>, vector<64x32xbf16>, vector<80x32xf32> -> vector<80x32xf32>
    %c0_22 = arith.constant 0 : index
    %c0_23 = arith.constant 0 : index
    %52 = vector.load %arg9[%c0_22, %c0_23] : memref<1x32xf32, #tpu.memory_space<vmem>>, vector<1x32xf32>
    %53 = vector.broadcast %52 : vector<1x32xf32> to vector<80x32xf32>
    %54 = arith.addf %51, %53 : vector<80x32xf32>
    %55 = vector.shape_cast %54 : vector<80x32xf32> to vector<10x8x32xf32>
    %56 = vector.extract_strided_slice %55 {offsets = [6, 0, 0], sizes = [4, 8, 32], strides = [1, 1, 1]} : vector<10x8x32xf32> to vector<4x8x32xf32>
    %57 = vector.shape_cast %56 : vector<4x8x32xf32> to vector<32x32xf32>
    %cst_24 = arith.constant dense<0.000000e+00> : vector<32xf32>
    %58 = vector.multi_reduction <add>, %57, %cst_24 [1] : vector<32x32xf32> to vector<32xf32>
    %59 = vector.shape_cast %58 : vector<32xf32> to vector<32x1xf32>
    %cst_25 = arith.constant dense<0.000000e+00> : vector<1xf32>
    %60 = vector.multi_reduction <add>, %59, %cst_25 [0] : vector<32x1xf32> to vector<1xf32>
    %61 = vector.shape_cast %60 : vector<1xf32> to vector<1x1xf32>
    %cst_26 = arith.constant 1.024000e+03 : f32
    %62 = vector.broadcast %cst_26 : f32 to vector<1x1xf32>
    %63 = arith.divf %61, %62 : vector<1x1xf32>
    %64 = vector.broadcast %63 : vector<1x1xf32> to vector<32x32xf32>
    %65 = arith.subf %57, %64 : vector<32x32xf32>
    %66 = arith.mulf %65, %65 : vector<32x32xf32>
    %cst_27 = arith.constant dense<0.000000e+00> : vector<32xf32>
    %67 = vector.multi_reduction <add>, %66, %cst_27 [1] : vector<32x32xf32> to vector<32xf32>
    %68 = vector.shape_cast %67 : vector<32xf32> to vector<32x1xf32>
    %cst_28 = arith.constant dense<0.000000e+00> : vector<1xf32>
    %69 = vector.multi_reduction <add>, %68, %cst_28 [0] : vector<32x1xf32> to vector<1xf32>
    %70 = vector.shape_cast %69 : vector<1xf32> to vector<1x1xf32>
    %cst_29 = arith.constant 1.024000e+03 : f32
    %71 = vector.broadcast %cst_29 : f32 to vector<1x1xf32>
    %72 = arith.divf %70, %71 : vector<1x1xf32>
    %cst_30 = arith.constant 9.99999974E-6 : f32
    %73 = vector.broadcast %cst_30 : f32 to vector<1x1xf32>
    %74 = arith.addf %72, %73 : vector<1x1xf32>
    %75 = math.rsqrt %74 : vector<1x1xf32>
    %76 = vector.broadcast %75 : vector<1x1xf32> to vector<32x32xf32>
    %77 = arith.mulf %65, %76 : vector<32x32xf32>
    %78 = arith.truncf %77 : vector<32x32xf32> to vector<32x32xbf16>
    %c0_31 = arith.constant 0 : index
    %c0_32 = arith.constant 0 : index
    %79 = vector.load %arg10[%c0_31, %c0_32] : memref<32x128xbf16, #tpu.memory_space<vmem>>, vector<32x128xbf16>
    %cst_33 = arith.constant dense<0.000000e+00> : vector<32x128xf32>
    %80 = tpu.matmul %78, %79, %cst_33 {dimension_numbers = #tpu.dot_dimension_numbers<[1], [0], [0], [1], [0, 0, 1, 1], [], []>} : vector<32x32xbf16>, vector<32x128xbf16>, vector<32x128xf32> -> vector<32x128xf32>
    %c0_34 = arith.constant 0 : index
    %c0_35 = arith.constant 0 : index
    %81 = vector.load %arg11[%c0_34, %c0_35] : memref<1x128xf32, #tpu.memory_space<vmem>>, vector<1x128xf32>
    %82 = vector.broadcast %81 : vector<1x128xf32> to vector<32x128xf32>
    %83 = arith.addf %80, %82 : vector<32x128xf32>
    %cst_36 = arith.constant 0.000000e+00 : f32
    %84 = vector.broadcast %cst_36 : f32 to vector<32x128xf32>
    %85 = arith.maximumf %83, %84 : vector<32x128xf32>
    %86 = arith.truncf %85 : vector<32x128xf32> to vector<32x128xbf16>
    %87 = vector.extract_strided_slice %86 {offsets = [0, 0], sizes = [32, 64], strides = [1, 1]} : vector<32x128xbf16> to vector<32x64xbf16>
    %c0_37 = arith.constant 0 : index
    %c0_38 = arith.constant 0 : index
    %88 = vector.load %arg12[%c0_37, %c0_38] : memref<64x8xbf16, #tpu.memory_space<vmem>>, vector<64x8xbf16>
    %cst_39 = arith.constant dense<0.000000e+00> : vector<32x8xf32>
    %89 = tpu.matmul %87, %88, %cst_39 {dimension_numbers = #tpu.dot_dimension_numbers<[1], [0], [0], [1], [0, 0, 1, 1], [], []>} : vector<32x64xbf16>, vector<64x8xbf16>, vector<32x8xf32> -> vector<32x8xf32>
    %c0_40 = arith.constant 0 : index
    %c0_41 = arith.constant 0 : index
    %90 = vector.load %arg13[%c0_40, %c0_41] : memref<1x8xf32, #tpu.memory_space<vmem>>, vector<1x8xf32>
    %91 = vector.broadcast %90 : vector<1x8xf32> to vector<32x8xf32>
    %92 = arith.addf %89, %91 : vector<32x8xf32>
    %93 = vector.extract_strided_slice %86 {offsets = [0, 64], sizes = [32, 64], strides = [1, 1]} : vector<32x128xbf16> to vector<32x64xbf16>
    %c0_42 = arith.constant 0 : index
    %c0_43 = arith.constant 0 : index
    %94 = vector.load %arg14[%c0_42, %c0_43] : memref<64x8xbf16, #tpu.memory_space<vmem>>, vector<64x8xbf16>
    %cst_44 = arith.constant dense<0.000000e+00> : vector<32x8xf32>
    %95 = tpu.matmul %93, %94, %cst_44 {dimension_numbers = #tpu.dot_dimension_numbers<[1], [0], [0], [1], [0, 0, 1, 1], [], []>} : vector<32x64xbf16>, vector<64x8xbf16>, vector<32x8xf32> -> vector<32x8xf32>
    %c0_45 = arith.constant 0 : index
    %c0_46 = arith.constant 0 : index
    %96 = vector.load %arg15[%c0_45, %c0_46] : memref<1x8xf32, #tpu.memory_space<vmem>>, vector<1x8xf32>
    %97 = vector.broadcast %96 : vector<1x8xf32> to vector<32x8xf32>
    %98 = arith.addf %95, %97 : vector<32x8xf32>
    %99 = vector.shape_cast %92 : vector<32x8xf32> to vector<4x8x8xf32>
    %c0_47 = arith.constant 0 : index
    %c0_48 = arith.constant 0 : index
    %c0_49 = arith.constant 0 : index
    %c0_50 = arith.constant 0 : index
    %100 = vector.load %arg16[%c0_47, %c0_48, %c0_49, %c0_50] : memref<1x4x8x8xf32, #tpu.memory_space<vmem>>, vector<1x4x8x8xf32>
    %101 = vector.shape_cast %100 : vector<1x4x8x8xf32> to vector<4x8x8xf32>
    %102 = vector.shape_cast %99 : vector<4x8x8xf32> to vector<1x4x8x8xf32>
    tpu.vector_store %arg16[%c0_47, %c0_48, %c0_49, %c0_50], %102 {strides = array<i32>} : memref<1x4x8x8xf32, #tpu.memory_space<vmem>>, vector<1x4x8x8xf32>,
    %103 = vector.shape_cast %98 : vector<32x8xf32> to vector<4x8x8xf32>
    %c0_51 = arith.constant 0 : index
    %c0_52 = arith.constant 0 : index
    %c0_53 = arith.constant 0 : index
    %c0_54 = arith.constant 0 : index
    %104 = vector.load %arg17[%c0_51, %c0_52, %c0_53, %c0_54] : memref<1x4x8x8xf32, #tpu.memory_space<vmem>>, vector<1x4x8x8xf32>
    %105 = vector.shape_cast %104 : vector<1x4x8x8xf32> to vector<4x8x8xf32>
    %106 = vector.shape_cast %103 : vector<4x8x8xf32> to vector<1x4x8x8xf32>
    tpu.vector_store %arg17[%c0_51, %c0_52, %c0_53, %c0_54], %106 {strides = array<i32>} : memref<1x4x8x8xf32, #tpu.memory_space<vmem>>, vector<1x4x8x8xf32>,
    return
  }
  func.func @transform_0(%arg0: i32) -> (i32, i32, i32, i32) {
    %c0_i32 = arith.constant 0 : i32
    %c0_i32_0 = arith.constant 0 : i32
    %c0_i32_1 = arith.constant 0 : i32
    %c0_i32_2 = arith.constant 0 : i32
    return %arg0, %c0_i32, %c0_i32_0, %c0_i32_1 : i32, i32, i32, i32
  }
  func.func @transform_1(%arg0: i32) -> (i32, i32) {
    %c0_i32 = arith.constant 0 : i32
    %c0_i32_0 = arith.constant 0 : i32
    %c0_i32_1 = arith.constant 0 : i32
    return %c0_i32, %c0_i32_0 : i32, i32
  }
  func.func @transform_2(%arg0: i32) -> (i32, i32) {
    %c0_i32 = arith.constant 0 : i32
    %c0_i32_0 = arith.constant 0 : i32
    %c0_i32_1 = arith.constant 0 : i32
    return %c0_i32, %c0_i32_0 : i32, i32
  }
  func.func @transform_3(%arg0: i32) -> (i32, i32) {
    %c0_i32 = arith.constant 0 : i32
    %c0_i32_0 = arith.constant 0 : i32
    %c0_i32_1 = arith.constant 0 : i32
    return %c0_i32, %c0_i32_0 : i32, i32
  }
  func.func @transform_4(%arg0: i32) -> (i32, i32) {
    %c0_i32 = arith.constant 0 : i32
    %c0_i32_0 = arith.constant 0 : i32
    %c0_i32_1 = arith.constant 0 : i32
    return %c0_i32, %c0_i32_0 : i32, i32
  }
  func.func @transform_5(%arg0: i32) -> (i32, i32) {
    %c0_i32 = arith.constant 0 : i32
    %c0_i32_0 = arith.constant 0 : i32
    %c0_i32_1 = arith.constant 0 : i32
    return %c0_i32, %c0_i32_0 : i32, i32
  }
  func.func @transform_6(%arg0: i32) -> (i32, i32) {
    %c0_i32 = arith.constant 0 : i32
    %c0_i32_0 = arith.constant 0 : i32
    %c0_i32_1 = arith.constant 0 : i32
    return %c0_i32, %c0_i32_0 : i32, i32
  }
  func.func @transform_7(%arg0: i32) -> (i32, i32) {
    %c0_i32 = arith.constant 0 : i32
    %c0_i32_0 = arith.constant 0 : i32
    %c0_i32_1 = arith.constant 0 : i32
    return %c0_i32, %c0_i32_0 : i32, i32
  }
  func.func @transform_8(%arg0: i32) -> (i32, i32) {
    %c0_i32 = arith.constant 0 : i32
    %c0_i32_0 = arith.constant 0 : i32
    %c0_i32_1 = arith.constant 0 : i32
    return %c0_i32, %c0_i32_0 : i32, i32
  }
  func.func @transform_9(%arg0: i32) -> (i32, i32) {
    %c0_i32 = arith.constant 0 : i32
    %c0_i32_0 = arith.constant 0 : i32
    %c0_i32_1 = arith.constant 0 : i32
    return %c0_i32, %c0_i32_0 : i32, i32
  }
  func.func @transform_10(%arg0: i32) -> (i32, i32) {
    %c0_i32 = arith.constant 0 : i32
    %c0_i32_0 = arith.constant 0 : i32
    %c0_i32_1 = arith.constant 0 : i32
    return %c0_i32, %c0_i32_0 : i32, i32
  }
  func.func @transform_11(%arg0: i32) -> (i32, i32) {
    %c0_i32 = arith.constant 0 : i32
    %c0_i32_0 = arith.constant 0 : i32
    %c0_i32_1 = arith.constant 0 : i32
    return %c0_i32, %c0_i32_0 : i32, i32
  }
  func.func @transform_12(%arg0: i32) -> (i32, i32) {
    %c0_i32 = arith.constant 0 : i32
    %c0_i32_0 = arith.constant 0 : i32
    %c0_i32_1 = arith.constant 0 : i32
    return %c0_i32, %c0_i32_0 : i32, i32
  }
  func.func @transform_13(%arg0: i32) -> (i32, i32) {
    %c0_i32 = arith.constant 0 : i32
    %c0_i32_0 = arith.constant 0 : i32
    %c0_i32_1 = arith.constant 0 : i32
    return %c0_i32, %c0_i32_0 : i32, i32
  }
  func.func @transform_14(%arg0: i32) -> (i32, i32) {
    %c0_i32 = arith.constant 0 : i32
    %c0_i32_0 = arith.constant 0 : i32
    %c0_i32_1 = arith.constant 0 : i32
    return %c0_i32, %c0_i32_0 : i32, i32
  }
  func.func @transform_15(%arg0: i32) -> (i32, i32, i32, i32) {
    %c0_i32 = arith.constant 0 : i32
    %c0_i32_0 = arith.constant 0 : i32
    %c0_i32_1 = arith.constant 0 : i32
    %c0_i32_2 = arith.constant 0 : i32
    return %arg0, %c0_i32, %c0_i32_0, %c0_i32_1 : i32, i32, i32, i32
  }
  func.func @transform_16(%arg0: i32) -> (i32, i32, i32, i32) {
    %c0_i32 = arith.constant 0 : i32
    %c0_i32_0 = arith.constant 0 : i32
    %c0_i32_1 = arith.constant 0 : i32
    %c0_i32_2 = arith.constant 0 : i32
    return %arg0, %c0_i32, %c0_i32_0, %c0_i32_1 : i32, i32, i32, i32
  }
}

</mosaic_0001>

<llo_original>
// kernel: beats_block_forward.1
$region0: #{beats_block_forward.1}
  #allocation0 [shape = 'u32[]', space=smem, size = 0x4, offset = 0x4, fixed_abs, tag = 'smem constant byte address 0x4 - core index']
  #allocation1 [shape = 'u32[72,128]{1,0:T(1,128)}', space=vmem, size = 0x9000, scoped, tag = 'internal scratch']
  %s0 = inlined_call_operand.vmem [shape: f32[2,16,8,4], index: 0, kind: input, shape index: {}]
  %s1 = inlined_call_operand.vmem [shape: bf16[8,8], index: 1, kind: input, shape index: {}]
  %s2 = inlined_call_operand.vmem [shape: bf16[8,8], index: 2, kind: input, shape index: {}]
  %s3 = inlined_call_operand.vmem [shape: bf16[4,32], index: 3, kind: input, shape index: {}]
  %s4 = inlined_call_operand.vmem [shape: f32[1,32], index: 4, kind: input, shape index: {}]
  %s5 = inlined_call_operand.vmem [shape: bf16[224,64], index: 5, kind: input, shape index: {}]
  %s6 = inlined_call_operand.vmem [shape: f32[1,64], index: 6, kind: input, shape index: {}]
  %s7 = inlined_call_operand.vmem [shape: bf16[64,32], index: 7, kind: input, shape index: {}]
  %s8 = inlined_call_operand.vmem [shape: f32[1,32], index: 8, kind: input, shape index: {}]
  %s9 = inlined_call_operand.vmem [shape: bf16[32,128], index: 9, kind: input, shape index: {}]
  %s10 = inlined_call_operand.vmem [shape: f32[1,128], index: 10, kind: input, shape index: {}]
  %s11 = inlined_call_operand.vmem [shape: bf16[64,8], index: 11, kind: input, shape index: {}]
  %s12 = inlined_call_operand.vmem [shape: f32[1,8], index: 12, kind: input, shape index: {}]
  %s13 = inlined_call_operand.vmem [shape: bf16[64,8], index: 13, kind: input, shape index: {}]
  %s14 = inlined_call_operand.vmem [shape: f32[1,8], index: 14, kind: input, shape index: {}]
  %s15 = inlined_call_operand.vmem [shape: f32[2,4,8,8], index: 15, kind: output, shape index: {0}]
  %s16 = inlined_call_operand.vmem [shape: f32[2,4,8,8], index: 16, kind: output, shape index: {1}]
  %17 = xla_tuple %s15, %s16
  %s18 = sld [smem:[#allocation0]]
  $region101: #{beats_block_forward.1} parent=0
    _
  %s20 = ssub.s32 1, %s18
  %s21 = scalar_select 0, %s20, %s18
  loop: start=0, step=1, limit=4
  $region2: #{beats_block_forward.1} parent=0 // loop_pre_header
    _
  $region3: #{beats_block_forward.1} parent=0 // loop_header
    %s23 = sphi 0, %s27
    %p24 = scmp.ge.s32.totalorder %s23, 4
    %s33 = sphi 0, %s35
    %s36 = sphi 0, %s33
    %s37 = sphi 0, %s36
    %s53 = sphi 0, %s37
    %s57 = sphi 0, %s57
    %s59 = sphi 0, %s57
    %s60 = sphi 0, %s59
    %s74 = sphi 0, %s60
    %s78 = sphi 0, %s78
    %s80 = sphi 0, %s78
    %s81 = sphi 0, %s80
    %s95 = sphi 0, %s81
    %s99 = sphi 0, %s99
    %s101 = sphi 0, %s99
    %s102 = sphi 0, %s101
    %s116 = sphi 0, %s102
    %s120 = sphi 0, %s120
    %s122 = sphi 0, %s120
    %s123 = sphi 0, %s122
    %s137 = sphi 0, %s123
    %s141 = sphi 0, %s141
    %s143 = sphi 0, %s141
    %s144 = sphi 0, %s143
    %s158 = sphi 0, %s144
    %s162 = sphi 0, %s162
    %s164 = sphi 0, %s162
    %s165 = sphi 0, %s164
    %s179 = sphi 0, %s165
    %s183 = sphi 0, %s183
    %s185 = sphi 0, %s183
    %s186 = sphi 0, %s185
    %s200 = sphi 0, %s186
    %s204 = sphi 0, %s204
    %s206 = sphi 0, %s204
    %s207 = sphi 0, %s206
    %s221 = sphi 0, %s207
    %s225 = sphi 0, %s225
    %s227 = sphi 0, %s225
    %s228 = sphi 0, %s227
    %s242 = sphi 0, %s228
    %s246 = sphi 0, %s246
    %s248 = sphi 0, %s246
    %s249 = sphi 0, %s248
    %s263 = sphi 0, %s249
    %s267 = sphi 0, %s267
    %s269 = sphi 0, %s267
    %s270 = sphi 0, %s269
    %s284 = sphi 0, %s270
    %s288 = sphi 0, %s288
    %s290 = sphi 0, %s288
    %s291 = sphi 0, %s290
    %s305 = sphi 0, %s291
    %s309 = sphi 0, %s309
    %s311 = sphi 0, %s309
    %s312 = sphi 0, %s311
    %s326 = sphi 0, %s312
    %s330 = sphi 0, %s330
    %s332 = sphi 0, %s330
    %s333 = sphi 0, %s332
    %s347 = sphi 0, %s333
    %s353 = sphi 0, %s355
    %s356 = sphi 0, %s353
    %s357 = sphi 0, %s356
    %s373 = sphi 0, %s357
    %s379 = sphi 0, %s381
    %s382 = sphi 0, %s379
    %s383 = sphi 0, %s382
    %s399 = sphi 0, %s383
  $region4: #{beats_block_forward.1} parent=0 // loop_header_branch
    %26 = sbr.rel (%p24) target = $region8
  $region5: #{beats_block_forward.1} parent=0 // loop_body
    %s28 = ssub.s32 %s23, 1
    %s29 = ssub.s32 %s23, 2
    %s30 = sadd.s32 %s23, 1
    %s31 = ssub.s32 %s23, %s30
    %p32 = scmp.eq.s32.totalorder %s31, 0
    %s34 = sadd.s32 %s33, 1
    %s35 = scalar_select %p32, %s33, %s34
    %p38 = pneg %p32
    %p39 = scmp.eq.s32.totalorder %s23, 1
    %p40 = por %p38, %p39
    %p41 = scmp.ne.s32.totalorder %s33, %s36
    %p42 = scmp.eq.s32.totalorder %s23, 0
    %p43 = por %p41, %p42
    %p44 = scmp.ne.s32.totalorder %s33, %s36
    %p45 = scmp.eq.s32.totalorder %s28, 1
    %p46 = por %p44, %p45
    %p47 = scmp.ne.s32.totalorder %s36, %s37
    %p48 = scmp.eq.s32.totalorder %s28, 0
    %p49 = por %p47, %p48
    %p50 = scmp.ne.s32.totalorder %s36, %s37
    %p51 = scmp.eq.s32.totalorder %s29, 1
    %p52 = por %p50, %p51
    %p54 = scmp.ne.s32.totalorder %s37, %s53
    %p55 = scmp.eq.s32.totalorder %s29, 0
    %p56 = por %p54, %p55
    %s58 = sadd.s32 %s57, 1
    %p61 = scmp.eq.s32.totalorder %s23, 1
    %p62 = scmp.ne.s32.totalorder %s57, %s59
    %p63 = scmp.eq.s32.totalorder %s23, 0
    %p64 = por %p62, %p63
    %p65 = scmp.ne.s32.totalorder %s57, %s59
    %p66 = scmp.eq.s32.totalorder %s28, 1
    %p67 = por %p65, %p66
    %p68 = scmp.ne.s32.totalorder %s59, %s60
    %p69 = scmp.eq.s32.totalorder %s28, 0
    %p70 = por %p68, %p69
    %p71 = scmp.ne.s32.totalorder %s59, %s60
    %p72 = scmp.eq.s32.totalorder %s29, 1
    %p73 = por %p71, %p72
    %p75 = scmp.ne.s32.totalorder %s60, %s74
    %p76 = scmp.eq.s32.totalorder %s29, 0
    %p77 = por %p75, %p76
    %s79 = sadd.s32 %s78, 1
    %p82 = scmp.eq.s32.totalorder %s23, 1
    %p83 = scmp.ne.s32.totalorder %s78, %s80
    %p84 = scmp.eq.s32.totalorder %s23, 0
    %p85 = por %p83, %p84
    %p86 = scmp.ne.s32.totalorder %s78, %s80
    %p87 = scmp.eq.s32.totalorder %s28, 1
    %p88 = por %p86, %p87
    %p89 = scmp.ne.s32.totalorder %s80, %s81
    %p90 = scmp.eq.s32.totalorder %s28, 0
    %p91 = por %p89, %p90
    %p92 = scmp.ne.s32.totalorder %s80, %s81
    %p93 = scmp.eq.s32.totalorder %s29, 1
    %p94 = por %p92, %p93
    %p96 = scmp.ne.s32.totalorder %s81, %s95
    %p97 = scmp.eq.s32.totalorder %s29, 0
    %p98 = por %p96, %p97
    %s100 = sadd.s32 %s99, 1
    %p103 = scmp.eq.s32.totalorder %s23, 1
    %p104 = scmp.ne.s32.totalorder %s99, %s101
    %p105 = scmp.eq.s32.totalorder %s23, 0
    %p106 = por %p104, %p105
    %p107 = scmp.ne.s32.totalorder %s99, %s101
    %p108 = scmp.eq.s32.totalorder %s28, 1
    %p109 = por %p107, %p108
    %p110 = scmp.ne.s32.totalorder %s101, %s102
    %p111 = scmp.eq.s32.totalorder %s28, 0
    %p112 = por %p110, %p111
    %p113 = scmp.ne.s32.totalorder %s101, %s102
    %p114 = scmp.eq.s32.totalorder %s29, 1
    %p115 = por %p113, %p114
    %p117 = scmp.ne.s32.totalorder %s102, %s116
    %p118 = scmp.eq.s32.totalorder %s29, 0
    %p119 = por %p117, %p118
    %s121 = sadd.s32 %s120, 1
    %p124 = scmp.eq.s32.totalorder %s23, 1
    %p125 = scmp.ne.s32.totalorder %s120, %s122
    %p126 = scmp.eq.s32.totalorder %s23, 0
    %p127 = por %p125, %p126
    %p128 = scmp.ne.s32.totalorder %s120, %s122
    %p129 = scmp.eq.s32.totalorder %s28, 1
    %p130 = por %p128, %p129
    %p131 = scmp.ne.s32.totalorder %s122, %s123
    %p132 = scmp.eq.s32.totalorder %s28, 0
    %p133 = por %p131, %p132
    %p134 = scmp.ne.s32.totalorder %s122, %s123
    %p135 = scmp.eq.s32.totalorder %s29, 1
    %p136 = por %p134, %p135
    %p138 = scmp.ne.s32.totalorder %s123, %s137
    %p139 = scmp.eq.s32.totalorder %s29, 0
    %p140 = por %p138, %p139
    %s142 = sadd.s32 %s141, 1
    %p145 = scmp.eq.s32.totalorder %s23, 1
    %p146 = scmp.ne.s32.totalorder %s141, %s143
    %p147 = scmp.eq.s32.totalorder %s23, 0
    %p148 = por %p146, %p147
    %p149 = scmp.ne.s32.totalorder %s141, %s143
    %p150 = scmp.eq.s32.totalorder %s28, 1
    %p151 = por %p149, %p150
    %p152 = scmp.ne.s32.totalorder %s143, %s144
    %p153 = scmp.eq.s32.totalorder %s28, 0
    %p154 = por %p152, %p153
    %p155 = scmp.ne.s32.totalorder %s143, %s144
    %p156 = scmp.eq.s32.totalorder %s29, 1
    %p157 = por %p155, %p156
    %p159 = scmp.ne.s32.totalorder %s144, %s158
    %p160 = scmp.eq.s32.totalorder %s29, 0
    %p161 = por %p159, %p160
    %s163 = sadd.s32 %s162, 1
    %p166 = scmp.eq.s32.totalorder %s23, 1
    %p167 = scmp.ne.s32.totalorder %s162, %s164
    %p168 = scmp.eq.s32.totalorder %s23, 0
    %p169 = por %p167, %p168
    %p170 = scmp.ne.s32.totalorder %s162, %s164
    %p171 = scmp.eq.s32.totalorder %s28, 1
    %p172 = por %p170, %p171
    %p173 = scmp.ne.s32.totalorder %s164, %s165
    %p174 = scmp.eq.s32.totalorder %s28, 0
    %p175 = por %p173, %p174
    %p176 = scmp.ne.s32.totalorder %s164, %s165
    %p177 = scmp.eq.s32.totalorder %s29, 1
    %p178 = por %p176, %p177
    %p180 = scmp.ne.s32.totalorder %s165, %s179
    %p181 = scmp.eq.s32.totalorder %s29, 0
    %p182 = por %p180, %p181
    %s184 = sadd.s32 %s183, 1
    %p187 = scmp.eq.s32.totalorder %s23, 1
    %p188 = scmp.ne.s32.totalorder %s183, %s185
    %p189 = scmp.eq.s32.totalorder %s23, 0
    %p190 = por %p188, %p189
    %p191 = scmp.ne.s32.totalorder %s183, %s185
    %p192 = scmp.eq.s32.totalorder %s28, 1
    %p193 = por %p191, %p192
    %p194 = scmp.ne.s32.totalorder %s185, %s186
    %p195 = scmp.eq.s32.totalorder %s28, 0
    %p196 = por %p194, %p195
    %p197 = scmp.ne.s32.totalorder %s185, %s186
    %p198 = scmp.eq.s32.totalorder %s29, 1
    %p199 = por %p197, %p198
    %p201 = scmp.ne.s32.totalorder %s186, %s200
    %p202 = scmp.eq.s32.totalorder %s29, 0
    %p203 = por %p201, %p202
    %s205 = sadd.s32 %s204, 1
    %p208 = scmp.eq.s32.totalorder %s23, 1
    %p209 = scmp.ne.s32.totalorder %s204, %s206
    %p210 = scmp.eq.s32.totalorder %s23, 0
    %p211 = por %p209, %p210
    %p212 = scmp.ne.s32.totalorder %s204, %s206
    %p213 = scmp.eq.s32.totalorder %s28, 1
    %p214 = por %p212, %p213
    %p215 = scmp.ne.s32.totalorder %s206, %s207
    %p216 = scmp.eq.s32.totalorder %s28, 0
    %p217 = por %p215, %p216
    %p218 = scmp.ne.s32.totalorder %s206, %s207
    %p219 = scmp.eq.s32.totalorder %s29, 1
    %p220 = por %p218, %p219
    %p222 = scmp.ne.s32.totalorder %s207, %s221
    %p223 = scmp.eq.s32.totalorder %s29, 0
    %p224 = por %p222, %p223
    %s226 = sadd.s32 %s225, 1
    %p229 = scmp.eq.s32.totalorder %s23, 1
    %p230 = scmp.ne.s32.totalorder %s225, %s227
    %p231 = scmp.eq.s32.totalorder %s23, 0
    %p232 = por %p230, %p231
    %p233 = scmp.ne.s32.totalorder %s225, %s227
    %p234 = scmp.eq.s32.totalorder %s28, 1
    %p235 = por %p233, %p234
    %p236 = scmp.ne.s32.totalorder %s227, %s228
    %p237 = scmp.eq.s32.totalorder %s28, 0
    %p238 = por %p236, %p237
    %p239 = scmp.ne.s32.totalorder %s227, %s228
    %p240 = scmp.eq.s32.totalorder %s29, 1
    %p241 = por %p239, %p240
    %p243 = scmp.ne.s32.totalorder %s228, %s242
    %p244 = scmp.eq.s32.totalorder %s29, 0
    %p245 = por %p243, %p244
    %s247 = sadd.s32 %s246, 1
    %p250 = scmp.eq.s32.totalorder %s23, 1
    %p251 = scmp.ne.s32.totalorder %s246, %s248
    %p252 = scmp.eq.s32.totalorder %s23, 0
    %p253 = por %p251, %p252
    %p254 = scmp.ne.s32.totalorder %s246, %s248
    %p255 = scmp.eq.s32.totalorder %s28, 1
    %p256 = por %p254, %p255
    %p257 = scmp.ne.s32.totalorder %s248, %s249
    %p258 = scmp.eq.s32.totalorder %s28, 0
    %p259 = por %p257, %p258
    %p260 = scmp.ne.s32.totalorder %s248, %s249
    %p261 = scmp.eq.s32.totalorder %s29, 1
    %p262 = por %p260, %p261
    %p264 = scmp.ne.s32.totalorder %s249, %s263
    %p265 = scmp.eq.s32.totalorder %s29, 0
    %p266 = por %p264, %p265
    %s268 = sadd.s32 %s267, 1
    %p271 = scmp.eq.s32.totalorder %s23, 1
    %p272 = scmp.ne.s32.totalorder %s267, %s269
    %p273 = scmp.eq.s32.totalorder %s23, 0
    %p274 = por %p272, %p273
    %p275 = scmp.ne.s32.totalorder %s267, %s269
    %p276 = scmp.eq.s32.totalorder %s28, 1
    %p277 = por %p275, %p276
    %p278 = scmp.ne.s32.totalorder %s269, %s270
    %p279 = scmp.eq.s32.totalorder %s28, 0
    %p280 = por %p278, %p279
    %p281 = scmp.ne.s32.totalorder %s269, %s270
    %p282 = scmp.eq.s32.totalorder %s29, 1
    %p283 = por %p281, %p282
    %p285 = scmp.ne.s32.totalorder %s270, %s284
    %p286 = scmp.eq.s32.totalorder %s29, 0
    %p287 = por %p285, %p286
    %s289 = sadd.s32 %s288, 1
    %p292 = scmp.eq.s32.totalorder %s23, 1
    %p293 = scmp.ne.s32.totalorder %s288, %s290
    %p294 = scmp.eq.s32.totalorder %s23, 0
    %p295 = por %p293, %p294
    %p296 = scmp.ne.s32.totalorder %s288, %s290
    %p297 = scmp.eq.s32.totalorder %s28, 1
    %p298 = por %p296, %p297
    %p299 = scmp.ne.s32.totalorder %s290, %s291
    %p300 = scmp.eq.s32.totalorder %s28, 0
    %p301 = por %p299, %p300
    %p302 = scmp.ne.s32.totalorder %s290, %s291
    %p303 = scmp.eq.s32.totalorder %s29, 1
    %p304 = por %p302, %p303
    %p306 = scmp.ne.s32.totalorder %s291, %s305
    %p307 = scmp.eq.s32.totalorder %s29, 0
    %p308 = por %p306, %p307
    %s310 = sadd.s32 %s309, 1
    %p313 = scmp.eq.s32.totalorder %s23, 1
    %p314 = scmp.ne.s32.totalorder %s309, %s311
    %p315 = scmp.eq.s32.totalorder %s23, 0
    %p316 = por %p314, %p315
    %p317 = scmp.ne.s32.totalorder %s309, %s311
    %p318 = scmp.eq.s32.totalorder %s28, 1
    %p319 = por %p317, %p318
    %p320 = scmp.ne.s32.totalorder %s311, %s312
    %p321 = scmp.eq.s32.totalorder %s28, 0
    %p322 = por %p320, %p321
    %p323 = scmp.ne.s32.totalorder %s311, %s312
    %p324 = scmp.eq.s32.totalorder %s29, 1
    %p325 = por %p323, %p324
    %p327 = scmp.ne.s32.totalorder %s312, %s326
    %p328 = scmp.eq.s32.totalorder %s29, 0
    %p329 = por %p327, %p328
    %s331 = sadd.s32 %s330, 1
    %p334 = scmp.eq.s32.totalorder %s23, 1
    %p335 = scmp.ne.s32.totalorder %s330, %s332
    %p336 = scmp.eq.s32.totalorder %s23, 0
    %p337 = por %p335, %p336
    %p338 = scmp.ne.s32.totalorder %s330, %s332
    %p339 = scmp.eq.s32.totalorder %s28, 1
    %p340 = por %p338, %p339
    %p341 = scmp.ne.s32.totalorder %s332, %s333
    %p342 = scmp.eq.s32.totalorder %s28, 0
    %p343 = por %p341, %p342
    %p344 = scmp.ne.s32.totalorder %s332, %s333
    %p345 = scmp.eq.s32.totalorder %s29, 1
    %p346 = por %p344, %p345
    %p348 = scmp.ne.s32.totalorder %s333, %s347
    %p349 = scmp.eq.s32.totalorder %s29, 0
    %p350 = por %p348, %p349
    %s351 = ssub.s32 %s23, %s30
    %p352 = scmp.eq.s32.totalorder %s351, 0
    %s354 = sadd.s32 %s353, 1
    %s355 = scalar_select %p352, %s353, %s354
    %p358 = pneg %p352
    %p359 = scmp.eq.s32.totalorder %s23, 1
    %p360 = por %p358, %p359
    %p361 = scmp.ne.s32.totalorder %s353, %s356
    %p362 = scmp.eq.s32.totalorder %s23, 0
    %p363 = por %p361, %p362
    %p364 = scmp.ne.s32.totalorder %s353, %s356
    %p365 = scmp.eq.s32.totalorder %s28, 1
    %p366 = por %p364, %p365
    %p367 = scmp.ne.s32.totalorder %s356, %s357
    %p368 = scmp.eq.s32.totalorder %s28, 0
    %p369 = por %p367, %p368
    %p370 = scmp.ne.s32.totalorder %s356, %s357
    %p371 = scmp.eq.s32.totalorder %s29, 1
    %p372 = por %p370, %p371
    %p374 = scmp.ne.s32.totalorder %s357, %s373
    %p375 = scmp.eq.s32.totalorder %s29, 0
    %p376 = por %p374, %p375
    %s377 = ssub.s32 %s23, %s30
    %p378 = scmp.eq.s32.totalorder %s377, 0
    %s380 = sadd.s32 %s379, 1
    %s381 = scalar_select %p378, %s379, %s380
    %p384 = pneg %p378
    %p385 = scmp.eq.s32.totalorder %s23, 1
    %p386 = por %p384, %p385
    %p387 = scmp.ne.s32.totalorder %s379, %s382
    %p388 = scmp.eq.s32.totalorder %s23, 0
    %p389 = por %p387, %p388
    %p390 = scmp.ne.s32.totalorder %s379, %s382
    %p391 = scmp.eq.s32.totalorder %s28, 1
    %p392 = por %p390, %p391
    %p393 = scmp.ne.s32.totalorder %s382, %s383
    %p394 = scmp.eq.s32.totalorder %s28, 0
    %p395 = por %p393, %p394
    %p396 = scmp.ne.s32.totalorder %s382, %s383
    %p397 = scmp.eq.s32.totalorder %s29, 1
    %p398 = por %p396, %p397
    %p400 = scmp.ne.s32.totalorder %s383, %s399
    %p401 = scmp.eq.s32.totalorder %s29, 0
    %p402 = por %p400, %p401
    %p403 = scmp.le.s32.totalorder 1, %s23
    %p404 = scmp.lt.s32.totalorder %s23, 3
    %p405 = pnand %p403, %p404
    %p406 = pneg %p405
    // Predicated region
    $region9: #{beats_block_forward.1} parent=5 // pred_check
      _
    $region10: #{beats_block_forward.1} parent=5 // pred_check_branch
      %408 = sbr.rel (%p405) target = $region12
    $region11: #{beats_block_forward.1} parent=5 // pred_region
      %s409 = ssub.s32 %s23, 1
      // Predicated region
      $region13: #{beats_block_forward.1} parent=11 // pred_check
        %p410 = pneg %p70
      $region14: #{beats_block_forward.1} parent=11 // pred_check_branch
        %412 = sbr.rel (%p410) target = $region16
      $region15: #{beats_block_forward.1} parent=11 // pred_region
        _
      $region16: #{beats_block_forward.1} parent=11 // pred_fallthru
        _
      // Predicated region
      $region17: #{beats_block_forward.1} parent=11 // pred_check
        %p413 = pneg %p91
      $region18: #{beats_block_forward.1} parent=11 // pred_check_branch
        %415 = sbr.rel (%p413) target = $region20
      $region19: #{beats_block_forward.1} parent=11 // pred_region
        _
      $region20: #{beats_block_forward.1} parent=11 // pred_fallthru
        _
      // Predicated region
      $region21: #{beats_block_forward.1} parent=11 // pred_check
        %p416 = pneg %p112
      $region22: #{beats_block_forward.1} parent=11 // pred_check_branch
        %418 = sbr.rel (%p416) target = $region24
      $region23: #{beats_block_forward.1} parent=11 // pred_region
        _
      $region24: #{beats_block_forward.1} parent=11 // pred_fallthru
        _
      // Predicated region
      $region25: #{beats_block_forward.1} parent=11 // pred_check
        %p419 = pneg %p133
      $region26: #{beats_block_forward.1} parent=11 // pred_check_branch
        %421 = sbr.rel (%p419) target = $region28
      $region27: #{beats_block_forward.1} parent=11 // pred_region
        _
      $region28: #{beats_block_forward.1} parent=11 // pred_fallthru
        _
      // Predicated region
      $region29: #{beats_block_forward.1} parent=11 // pred_check
        %p422 = pneg %p154
      $region30: #{beats_block_forward.1} parent=11 // pred_check_branch
        %424 = sbr.rel (%p422) target = $region32
      $region31: #{beats_block_forward.1} parent=11 // pred_region
        _
      $region32: #{beats_block_forward.1} parent=11 // pred_fallthru
        _
      // Predicated region
      $region33: #{beats_block_forward.1} parent=11 // pred_check
        %p425 = pneg %p175
      $region34: #{beats_block_forward.1} parent=11 // pred_check_branch
        %427 = sbr.rel (%p425) target = $region36
      $region35: #{beats_block_forward.1} parent=11 // pred_region
        _
      $region36: #{beats_block_forward.1} parent=11 // pred_fallthru
        _
      // Predicated region
      $region37: #{beats_block_forward.1} parent=11 // pred_check
        %p428 = pneg %p196
      $region38: #{beats_block_forward.1} parent=11 // pred_check_branch
        %430 = sbr.rel (%p428) target = $region40
      $region39: #{beats_block_forward.1} parent=11 // pred_region
        _
      $region40: #{beats_block_forward.1} parent=11 // pred_fallthru
        _
      // Predicated region
      $region41: #{beats_block_forward.1} parent=11 // pred_check
        %p431 = pneg %p217
      $region42: #{beats_block_forward.1} parent=11 // pred_check_branch
        %433 = sbr.rel (%p431) target = $region44
      $region43: #{beats_block_forward.1} parent=11 // pred_region
        _
      $region44: #{beats_block_forward.1} parent=11 // pred_fallthru
        _
      // Predicated region
      $region45: #{beats_block_forward.1} parent=11 // pred_check
        %p434 = pneg %p238
      $region46: #{beats_block_forward.1} parent=11 // pred_check_branch
        %436 = sbr.rel (%p434) target = $region48
      $region47: #{beats_block_forward.1} parent=11 // pred_region
        _
      $region48: #{beats_block_forward.1} parent=11 // pred_fallthru
        _
      // Predicated region
      $region49: #{beats_block_forward.1} parent=11 // pred_check
        %p437 = pneg %p259
      $region50: #{beats_block_forward.1} parent=11 // pred_check_branch
        %439 = sbr.rel (%p437) target = $region52
      $region51: #{beats_block_forward.1} parent=11 // pred_region
        _
      $region52: #{beats_block_forward.1} parent=11 // pred_fallthru
        _
      // Predicated region
      $region53: #{beats_block_forward.1} parent=11 // pred_check
        %p440 = pneg %p280
      $region54: #{beats_block_forward.1} parent=11 // pred_check_branch
        %442 = sbr.rel (%p440) target = $region56
      $region55: #{beats_block_forward.1} parent=11 // pred_region
        _
      $region56: #{beats_block_forward.1} parent=11 // pred_fallthru
        _
      // Predicated region
      $region57: #{beats_block_forward.1} parent=11 // pred_check
        %p443 = pneg %p301
      $region58: #{beats_block_forward.1} parent=11 // pred_check_branch
        %445 = sbr.rel (%p443) target = $region60
      $region59: #{beats_block_forward.1} parent=11 // pred_region
        _
      $region60: #{beats_block_forward.1} parent=11 // pred_fallthru
        _
      // Predicated region
      $region61: #{beats_block_forward.1} parent=11 // pred_check
        %p446 = pneg %p322
      $region62: #{beats_block_forward.1} parent=11 // pred_check_branch
        %448 = sbr.rel (%p446) target = $region64
      $region63: #{beats_block_forward.1} parent=11 // pred_region
        _
      $region64: #{beats_block_forward.1} parent=11 // pred_fallthru
        _
      // Predicated region
      $region65: #{beats_block_forward.1} parent=11 // pred_check
        %p449 = pneg %p343
      $region66: #{beats_block_forward.1} parent=11 // pred_check_branch
        %451 = sbr.rel (%p449) target = $region68
      $region67: #{beats_block_forward.1} parent=11 // pred_region
        _
      $region68: #{beats_block_forward.1} parent=11 // pred_fallthru
        _
    $region12: #{beats_block_forward.1} parent=5 // pred_fallthru
      _
    %p452 = scmp.lt.s32.totalorder %s23, 2
    // Predicated region
    $region69: #{beats_block_forward.1} parent=5 // pred_check
      %p453 = pneg %p452
    $region70: #{beats_block_forward.1} parent=5 // pred_check_branch
      %455 = sbr.rel (%p453) target = $region72
    $region71: #{beats_block_forward.1} parent=5 // pred_region
      // Predicated region
      $region73: #{beats_block_forward.1} parent=71 // pred_check
        %p456 = pneg %p43
      $region74: #{beats_block_forward.1} parent=71 // pred_check_branch
        %458 = sbr.rel (%p456) target = $region76
      $region75: #{beats_block_forward.1} parent=71 // pred_region
        %p459 = scmp.lt.s32.totalorder %s23, 1
        %s460 = scalar_select %p459, %s23, 1
        %s461 = smul.addr %s460, 16
        %s462 = smul.addr %s461, 8
        %s463 = scalar_lea.vmem %s0, %s462
      $region76: #{beats_block_forward.1} parent=71 // pred_fallthru
        _
    $region72: #{beats_block_forward.1} parent=5 // pred_fallthru
      _
    %p464 = scmp.le.s32.totalorder 1, %s23
    %p465 = scmp.lt.s32.totalorder %s23, 3
    %p466 = pnand %p464, %p465
    %p467 = pneg %p466
    // Predicated region
    $region77: #{beats_block_forward.1} parent=5 // pred_check
      _
    $region78: #{beats_block_forward.1} parent=5 // pred_check_branch
      %469 = sbr.rel (%p466) target = $region80
    $region79: #{beats_block_forward.1} parent=5 // pred_region
      %s470 = ssub.s32 %s23, 1
      %p471 = scmp.lt.s32.totalorder %s28, 1
      %s472 = scalar_select %p471, %s28, 1
      %s473 = smul.addr %s472, 16
      %s474 = smul.addr %s473, 8
      %s475 = scalar_lea.vmem %s0, %s474
      %p476 = pneg %p49
      %p477 = pneg %p46
      %p478 = pneg %p70
      %p479 = pneg %p67
      %p480 = pneg %p91
      %p481 = pneg %p88
      %p482 = pneg %p112
      %p483 = pneg %p109
      %p484 = pneg %p133
      %p485 = pneg %p130
      %p486 = pneg %p154
      %p487 = pneg %p151
      %p488 = pneg %p175
      %p489 = pneg %p172
      %p490 = pneg %p196
      %p491 = pneg %p193
      %p492 = pneg %p217
      %p493 = pneg %p214
      %p494 = pneg %p238
      %p495 = pneg %p235
      %p496 = pneg %p259
      %p497 = pneg %p256
      %p498 = pneg %p280
      %p499 = pneg %p277
      %p500 = pneg %p301
      %p501 = pneg %p298
      %p502 = pneg %p322
      %p503 = pneg %p319
      %p504 = pneg %p343
      %p505 = pneg %p340
      %p506 = pneg %p369
      %p507 = pneg %p366
      %p508 = scmp.lt.s32.totalorder %s28, 1
      %s509 = scalar_select %p508, %s28, 1
      %s510 = smul.addr %s509, 4
      %s511 = smul.addr %s510, 8
      %s512 = scalar_lea.vmem %s15, %s511
      %p513 = pneg %p395
      %p514 = pneg %p392
      %p515 = scmp.lt.s32.totalorder %s28, 1
      %s516 = scalar_select %p515, %s28, 1
      %s517 = smul.addr %s516, 4
      %s518 = smul.addr %s517, 8
      %s519 = scalar_lea.vmem %s16, %s518
      %p520 = scmp.lt.s32.totalorder %s28, 1
      %s521 = scalar_select %p520, %s28, 1
      %s522 = smul.addr %s521, 16
      %s523 = smul.addr %s522, 8
      %s524 = scalar_lea.vmem %s0, %s523
      %p525 = scmp.lt.s32.totalorder %s28, 1
      %s526 = scalar_select %p525, %s28, 1
      %s527 = smul.addr %s526, 4
      %s528 = smul.addr %s527, 8
      %s529 = scalar_lea.vmem %s15, %s528
      %p530 = scmp.lt.s32.totalorder %s28, 1
      %s531 = scalar_select %p530, %s28, 1
      %s532 = smul.addr %s531, 4
      %s533 = smul.addr %s532, 8
      %s534 = scalar_lea.vmem %s16, %s533
      %v536 = vld [vmem:[%s524] sm:$0xff]
      %v537 = vld [vmem:[%s524 + $0x8] sm:$0xff]
      %v538 = vld [vmem:[%s524 + $0x10] sm:$0xff]
      %v539 = vld [vmem:[%s524 + $0x18] sm:$0xff]
      %v540 = vld [vmem:[%s524 + $0x20] sm:$0xff]
      %v541 = vld [vmem:[%s524 + $0x28] sm:$0xff]
      %v542 = vld [vmem:[%s524 + $0x30] sm:$0xff]
      %v543 = vld [vmem:[%s524 + $0x38] sm:$0xff]
      %v544 = vld [vmem:[%s524 + $0x40] sm:$0xff]
      %v545 = vld [vmem:[%s524 + $0x48] sm:$0xff]
      %v546 = vld [vmem:[%s524 + $0x50] sm:$0xff]
      %v547 = vld [vmem:[%s524 + $0x58] sm:$0xff]
      %v548 = vld [vmem:[%s524 + $0x60] sm:$0xff]
      %v549 = vld [vmem:[%s524 + $0x68] sm:$0xff]
      %v550 = vld [vmem:[%s524 + $0x70] sm:$0xff]
      %v551 = vld [vmem:[%s524 + $0x78] sm:$0xff]
      %v552 = vpack.c.bf16 %v537, %v536
      %v553 = vpack.c.bf16 %v539, %v538
      %v554 = vpack.c.bf16 %v541, %v540
      %v555 = vpack.c.bf16 %v543, %v542
      %v556 = vpack.c.bf16 %v545, %v544
      %v557 = vpack.c.bf16 %v547, %v546
      %v558 = vpack.c.bf16 %v549, %v548
      %v559 = vpack.c.bf16 %v551, %v550
      %v560 = vld [vmem:[%s3] sm:$0x3]
      %v561 = vld [vmem:[%s4] sm:$0x1]
      %v563 = vperm.slane %v561, 0
      %vm565 = vcmask 31744
      %v567 = vsel %vm565, %v552, 0
      %v570 = vsel %vm565, %v553, 0
      %v573 = vsel %vm565, %v554, 0
      %v576 = vsel %vm565, %v555, 0
      %v579 = vsel %vm565, %v556, 0
      %v582 = vsel %vm565, %v557, 0
      %v585 = vsel %vm565, %v558, 0
      %v588 = vsel %vm565, %v559, 0
      %vm590 = vcmask 1041408
      %v592 = vsel %vm590, %v560, 0
      %594 = vmatpush.bf16.msra.mxu0 0
      %595 = vmatpush.bf16.msra.mxu0 0
      %596 = vmatpush.bf16.msra.mxu0 0
      %597 = vmatpush.bf16.msra.mxu0 0
      %598 = vmatpush.bf16.msra.mxu0 0
      %599 = vmatpush.bf16.msra.mxu0 0
      %600 = vmatpush.bf16.msra.mxu0 0
      %601 = vmatpush.bf16.msra.mxu0 %v592
      %602 = vmatmul.bf16.gmra.mxu0 %v567
      %v603 = vpop.f32.mrf.mxu0
      %v604 = vadd.f32 %v563, %v603
      %v605 = vpop.f32.mrf.mxu0
      %v606 = vadd.f32 %v563, %v605
      %607 = vmatmul.bf16.gmra.mxu0 %v570
      %v608 = vpop.f32.mrf.mxu0
      %v609 = vadd.f32 %v563, %v608
      %v610 = vpop.f32.mrf.mxu0
      %v611 = vadd.f32 %v563, %v610
      %612 = vmatmul.bf16.gmra.mxu0 %v573
      %v613 = vpop.f32.mrf.mxu0
      %v614 = vadd.f32 %v563, %v613
      %v615 = vpop.f32.mrf.mxu0
      %v616 = vadd.f32 %v563, %v615
      %617 = vmatmul.bf16.gmra.mxu0 %v576
      %v618 = vpop.f32.mrf.mxu0
      %v619 = vadd.f32 %v563, %v618
      %v620 = vpop.f32.mrf.mxu0
      %v621 = vadd.f32 %v563, %v620
      %622 = vmatmul.bf16.gmra.mxu0 %v579
      %v623 = vpop.f32.mrf.mxu0
      %v624 = vadd.f32 %v563, %v623
      %v625 = vpop.f32.mrf.mxu0
      %v626 = vadd.f32 %v563, %v625
      %627 = vmatmul.bf16.gmra.mxu0 %v582
      %v628 = vpop.f32.mrf.mxu0
      %v629 = vadd.f32 %v563, %v628
      %v630 = vpop.f32.mrf.mxu0
      %v631 = vadd.f32 %v563, %v630
      %632 = vmatmul.bf16.gmra.mxu0 %v585
      %v633 = vpop.f32.mrf.mxu0
      %v634 = vadd.f32 %v563, %v633
      %v635 = vpop.f32.mrf.mxu0
      %v636 = vadd.f32 %v563, %v635
      %637 = vmatmul.bf16.gmra.mxu0 %v588
      %v638 = vpop.f32.mrf.mxu0
      %v639 = vadd.f32 %v563, %v638
      %v640 = vpop.f32.mrf.mxu0
      %v641 = vadd.f32 %v563, %v640
      %642 = vdwg.mxu0
      %653 = vrot.lane.b32.xlu0 %v606, 32
      %v654 = vpop.permute.xlu0 %653
      %655 = vrot.lane.b32.xlu0 %v609, 32
      %v656 = vpop.permute.xlu0 %655
      %657 = vrot.lane.b32.xlu0 %v611, 32
      %v658 = vpop.permute.xlu0 %657
      %659 = vrot.lane.b32.xlu0 %v614, 32
      %v660 = vpop.permute.xlu0 %659
      %661 = vrot.lane.b32.xlu0 %v616, 32
      %v662 = vpop.permute.xlu0 %661
      %663 = vrot.lane.b32.xlu0 %v619, 32
      %v664 = vpop.permute.xlu0 %663
      %665 = vrot.lane.b32.xlu0 %v621, 32
      %v666 = vpop.permute.xlu0 %665
      %667 = vrot.lane.b32.xlu0 %v624, 32
      %v668 = vpop.permute.xlu0 %667
      %669 = vrot.lane.b32.xlu0 %v626, 32
      %v670 = vpop.permute.xlu0 %669
      %671 = vrot.lane.b32.xlu0 %v629, 32
      %v672 = vpop.permute.xlu0 %671
      %684 = vrot.lane.b32.xlu0 %v609, 64
      %v685 = vpop.permute.xlu0 %684
      %686 = vrot.lane.b32.xlu0 %v611, 64
      %v687 = vpop.permute.xlu0 %686
      %688 = vrot.lane.b32.xlu0 %v614, 64
      %v689 = vpop.permute.xlu0 %688
      %690 = vrot.lane.b32.xlu0 %v616, 64
      %v691 = vpop.permute.xlu0 %690
      %692 = vrot.lane.b32.xlu0 %v619, 64
      %v693 = vpop.permute.xlu0 %692
      %694 = vrot.lane.b32.xlu0 %v621, 64
      %v695 = vpop.permute.xlu0 %694
      %696 = vrot.lane.b32.xlu0 %v624, 64
      %v697 = vpop.permute.xlu0 %696
      %698 = vrot.lane.b32.xlu0 %v626, 64
      %v699 = vpop.permute.xlu0 %698
      %700 = vrot.lane.b32.xlu0 %v629, 64
      %v701 = vpop.permute.xlu0 %700
      %702 = vrot.lane.b32.xlu0 %v631, 64
      %v703 = vpop.permute.xlu0 %702
      %715 = vrot.lane.b32.xlu0 %v611, 96
      %v716 = vpop.permute.xlu0 %715
      %717 = vrot.lane.b32.xlu0 %v614, 96
      %v718 = vpop.permute.xlu0 %717
      %719 = vrot.lane.b32.xlu0 %v616, 96
      %v720 = vpop.permute.xlu0 %719
      %721 = vrot.lane.b32.xlu0 %v619, 96
      %v722 = vpop.permute.xlu0 %721
      %723 = vrot.lane.b32.xlu0 %v621, 96
      %v724 = vpop.permute.xlu0 %723
      %725 = vrot.lane.b32.xlu0 %v624, 96
      %v726 = vpop.permute.xlu0 %725
      %727 = vrot.lane.b32.xlu0 %v626, 96
      %v728 = vpop.permute.xlu0 %727
      %729 = vrot.lane.b32.xlu0 %v629, 96
      %v730 = vpop.permute.xlu0 %729
      %731 = vrot.lane.b32.xlu0 %v631, 96
      %v732 = vpop.permute.xlu0 %731
      %733 = vrot.lane.b32.xlu0 %v634, 96
      %v734 = vpop.permute.xlu0 %733
      %747 = vrot.lane.b32.xlu0 %v631, 32
      %v748 = vpop.permute.xlu0 %747
      %749 = vrot.lane.b32.xlu0 %v634, 32
      %v750 = vpop.permute.xlu0 %749
      %751 = vrot.lane.b32.xlu0 %v636, 32
      %v752 = vpop.permute.xlu0 %751
      %753 = vrot.lane.b32.xlu0 %v639, 32
      %v754 = vpop.permute.xlu0 %753
      %760 = vrot.lane.b32.xlu0 %v634, 64
      %v761 = vpop.permute.xlu0 %760
      %762 = vrot.lane.b32.xlu0 %v636, 64
      %v763 = vpop.permute.xlu0 %762
      %764 = vrot.lane.b32.xlu0 %v639, 64
      %v765 = vpop.permute.xlu0 %764
      %766 = vrot.lane.b32.xlu0 %v641, 64
      %v767 = vpop.permute.xlu0 %766
      %vm772 = vcmask 261120
      %v773 = vsel %vm772, %v604, %v654
      %v774 = vsel %vm772, %v606, %v656
      %v775 = vsel %vm772, %v609, %v658
      %v776 = vsel %vm772, %v611, %v660
      %v777 = vsel %vm772, %v614, %v662
      %v778 = vsel %vm772, %v616, %v664
      %v779 = vsel %vm772, %v619, %v666
      %v780 = vsel %vm772, %v621, %v668
      %v781 = vsel %vm772, %v624, %v670
      %v782 = vsel %vm772, %v626, %v672
      %vm783 = vcmask 523264
      %v784 = vsel %vm783, %v773, %v685
      %v785 = vsel %vm783, %v774, %v687
      %v786 = vsel %vm783, %v775, %v689
      %v787 = vsel %vm783, %v776, %v691
      %v788 = vsel %vm783, %v777, %v693
      %v789 = vsel %vm783, %v778, %v695
      %v790 = vsel %vm783, %v779, %v697
      %v791 = vsel %vm783, %v780, %v699
      %v792 = vsel %vm783, %v781, %v701
      %v793 = vsel %vm783, %v782, %v703
      %vm794 = vcmask 785408
      %v795 = vsel %vm794, %v784, %v716
      %v796 = vsel %vm794, %v785, %v718
      %v797 = vsel %vm794, %v786, %v720
      %v798 = vsel %vm794, %v787, %v722
      %v799 = vsel %vm794, %v788, %v724
      %v800 = vsel %vm794, %v789, %v726
      %v801 = vsel %vm794, %v790, %v728
      %v802 = vsel %vm794, %v791, %v730
      %v803 = vsel %vm794, %v792, %v732
      %v804 = vsel %vm794, %v793, %v734
      %v805 = vsel %vm772, %v629, %v748
      %v806 = vsel %vm772, %v631, %v750
      %v807 = vsel %vm772, %v634, %v752
      %v808 = vsel %vm772, %v636, %v754
      %v809 = vsel %vm783, %v805, %v761
      %v810 = vsel %vm783, %v806, %v763
      %v811 = vsel %vm783, %v807, %v765
      %v812 = vsel %vm783, %v808, %v767
      %v813 = vpack.c.bf16 %v796, %v795
      %v814 = vpack.c.bf16 %v789, %v788
      %v815 = vpack.c.bf16 %v798, %v797
      %v816 = vpack.c.bf16 %v791, %v790
      %v817 = vpack.c.bf16 %v800, %v799
      %v818 = vpack.c.bf16 %v793, %v792
      %v819 = vpack.c.bf16 %v802, %v801
      %v820 = vpack.c.bf16 %v810, %v809
      %v821 = vpack.c.bf16 %v804, %v803
      %v822 = vpack.c.bf16 %v812, %v811
      %v823 = vld [vmem:[%s5] sm:$0xf]
      %v824 = vld [vmem:[%s5 + $0x4] sm:$0xf]
      %v825 = vld [vmem:[%s5 + $0x8] sm:$0xf]
      %v826 = vld [vmem:[%s5 + $0xc] sm:$0xf]
      %v827 = vld [vmem:[%s5 + $0x10] sm:$0xf]
      %v828 = vld [vmem:[%s5 + $0x14] sm:$0xf]
      %v829 = vld [vmem:[%s5 + $0x18] sm:$0xf]
      %v830 = vld [vmem:[%s5 + $0x1c] sm:$0xf]
      %v831 = vld [vmem:[%s5 + $0x20] sm:$0xf]
      %v832 = vld [vmem:[%s5 + $0x24] sm:$0xf]
      %v833 = vld [vmem:[%s5 + $0x28] sm:$0xf]
      %v834 = vld [vmem:[%s5 + $0x2c] sm:$0xf]
      %v835 = vld [vmem:[%s5 + $0x30] sm:$0xf]
      %v836 = vld [vmem:[%s5 + $0x34] sm:$0xf]
      %v837 = vld [vmem:[%s5 + $0x38] sm:$0xf]
      %v838 = vld [vmem:[%s5 + $0x3c] sm:$0xf]
      %v839 = vld [vmem:[%s5 + $0x40] sm:$0xf]
      %v840 = vld [vmem:[%s5 + $0x44] sm:$0xf]
      %v841 = vld [vmem:[%s5 + $0x48] sm:$0xf]
      %v842 = vld [vmem:[%s5 + $0x4c] sm:$0xf]
      %v843 = vld [vmem:[%s5 + $0x50] sm:$0xf]
      %v844 = vld [vmem:[%s5 + $0x54] sm:$0xf]
      %v845 = vld [vmem:[%s5 + $0x58] sm:$0xf]
      %v846 = vld [vmem:[%s5 + $0x5c] sm:$0xf]
      %v847 = vld [vmem:[%s5 + $0x60] sm:$0xf]
      %v848 = vld [vmem:[%s5 + $0x64] sm:$0xf]
      %v849 = vld [vmem:[%s5 + $0x68] sm:$0xf]
      %v850 = vld [vmem:[%s5 + $0x6c] sm:$0xf]
      %v851 = vld [vmem:[%s6] sm:$0x1]
      %v853 = vperm.slane %v851, 0
      %v883 = vunpack.c.l.b16 %v823
      %v884 = vunpack.c.l.b16 %v824
      %v885 = vunpack.c.l.b16 %v825
      %v886 = vunpack.c.l.b16 %v826
      %v887 = vunpack.c.l.b16 %v827
      %v888 = vunpack.c.l.b16 %v828
      %v889 = vunpack.c.l.b16 %v829
      %v890 = vunpack.c.l.b16 %v830
      %v891 = vunpack.c.l.b16 %v831
      %v892 = vunpack.c.l.b16 %v832
      %v893 = vunpack.c.l.b16 %v833
      %v894 = vunpack.c.l.b16 %v834
      %v895 = vunpack.c.l.b16 %v835
      %v896 = vunpack.c.l.b16 %v836
      %v897 = vunpack.c.l.b16 %v837
      %v898 = vunpack.c.l.b16 %v838
      %v899 = vunpack.c.l.b16 %v839
      %v900 = vunpack.c.l.b16 %v840
      %v901 = vunpack.c.l.b16 %v841
      %v902 = vunpack.c.l.b16 %v842
      %v903 = vunpack.c.l.b16 %v843
      %v904 = vunpack.c.l.b16 %v844
      %v905 = vunpack.c.l.b16 %v845
      %v906 = vunpack.c.l.b16 %v846
      %v907 = vunpack.c.l.b16 %v847
      %v908 = vunpack.c.l.b16 %v848
      %v909 = vunpack.c.l.b16 %v849
      %v910 = vunpack.c.l.b16 %v850
      %v911 = vpack.c.b16 %v884, %v883
      %v912 = vpack.c.b16 %v886, %v885
      %v913 = vpack.c.b16 %v888, %v887
      %v914 = vpack.c.b16 %v890, %v889
      %v915 = vpack.c.b16 %v892, %v891
      %v916 = vpack.c.b16 %v894, %v893
      %v917 = vpack.c.b16 %v896, %v895
      %v918 = vpack.c.b16 %v898, %v897
      %v919 = vpack.c.b16 %v900, %v899
      %v920 = vpack.c.b16 %v902, %v901
      %v921 = vpack.c.b16 %v904, %v903
      %v922 = vpack.c.b16 %v906, %v905
      %v923 = vpack.c.b16 %v908, %v907
      %v924 = vpack.c.b16 %v910, %v909
      %v940 = vsel %vm794, %v814, 0
      %v943 = vsel %vm794, %v816, 0
      %v946 = vsel %vm794, %v818, 0
      %v949 = vsel %vm794, %v820, 0
      %v952 = vsel %vm794, %v822, 0
      %954 = vmatpush.bf16.msra.mxu0 %v918
      %955 = vmatpush.bf16.msra.mxu0 %v917
      %956 = vmatpush.bf16.msra.mxu0 %v916
      %957 = vmatpush.bf16.msra.mxu0 %v915
      %958 = vmatpush.bf16.msra.mxu0 %v914
      %959 = vmatpush.bf16.msra.mxu0 %v913
      %960 = vmatpush.bf16.msra.mxu0 %v912
      %961 = vmatpush.bf16.msra.mxu0 %v911
      %962 = vmatmul.bf16.gmra.mxu0 %v813
      %v963 = vpop.f32.mrf.mxu0
      %v964 = vadd.f32 %v853, %v963
      %v965 = vpop.f32.mrf.mxu0
      %v966 = vadd.f32 %v853, %v965
      %967 = vmatmul.bf16.gmra.mxu0 %v815
      %v968 = vpop.f32.mrf.mxu0
      %v969 = vadd.f32 %v853, %v968
      %v970 = vpop.f32.mrf.mxu0
      %v971 = vadd.f32 %v853, %v970
      %972 = vmatmul.bf16.gmra.mxu0 %v817
      %v973 = vpop.f32.mrf.mxu0
      %v974 = vadd.f32 %v853, %v973
      %v975 = vpop.f32.mrf.mxu0
      %v976 = vadd.f32 %v853, %v975
      %977 = vmatmul.bf16.gmra.mxu0 %v819
      %v978 = vpop.f32.mrf.mxu0
      %v979 = vadd.f32 %v853, %v978
      %v980 = vpop.f32.mrf.mxu0
      %v981 = vadd.f32 %v853, %v980
      %982 = vmatmul.bf16.gmra.mxu0 %v821
      %v983 = vpop.f32.mrf.mxu0
      %v984 = vadd.f32 %v853, %v983
      %v985 = vpop.f32.mrf.mxu0
      %v986 = vadd.f32 %v853, %v985
      %987 = vdwg.mxu0
      %988 = vmatpush.bf16.msra.mxu0 0
      %989 = vmatpush.bf16.msra.mxu0 0
      %990 = vmatpush.bf16.msra.mxu0 %v924
      %991 = vmatpush.bf16.msra.mxu0 %v923
      %992 = vmatpush.bf16.msra.mxu0 %v922
      %993 = vmatpush.bf16.msra.mxu0 %v921
      %994 = vmatpush.bf16.msra.mxu0 %v920
      %995 = vmatpush.bf16.msra.mxu0 %v919
      %996 = vmatmul.bf16.gmra.mxu0 %v940
      %v997 = vpop.f32.mrf.mxu0
      %v998 = vadd.f32 %v964, %v997
      %v999 = vpop.f32.mrf.mxu0
      %v1000 = vadd.f32 %v966, %v999
      %1001 = vmatmul.bf16.gmra.mxu0 %v943
      %v1002 = vpop.f32.mrf.mxu0
      %v1003 = vadd.f32 %v969, %v1002
      %v1004 = vpop.f32.mrf.mxu0
      %v1005 = vadd.f32 %v971, %v1004
      %1006 = vmatmul.bf16.gmra.mxu0 %v946
      %v1007 = vpop.f32.mrf.mxu0
      %v1008 = vadd.f32 %v974, %v1007
      %v1009 = vpop.f32.mrf.mxu0
      %v1010 = vadd.f32 %v976, %v1009
      %1011 = vmatmul.bf16.gmra.mxu0 %v949
      %v1012 = vpop.f32.mrf.mxu0
      %v1013 = vadd.f32 %v979, %v1012
      %v1014 = vpop.f32.mrf.mxu0
      %v1015 = vadd.f32 %v981, %v1014
      %1016 = vmatmul.bf16.gmra.mxu0 %v952
      %v1017 = vpop.f32.mrf.mxu0
      %v1018 = vadd.f32 %v984, %v1017
      %v1019 = vpop.f32.mrf.mxu0
      %v1020 = vadd.f32 %v986, %v1019
      %1021 = vdwg.mxu0
      %v1022 = vtanh.pop %v998
      %v1023 = vtanh.pop %v1000
      %v1024 = vtanh.pop %v1003
      %v1025 = vtanh.pop %v1005
      %v1026 = vtanh.pop %v1008
      %v1027 = vtanh.pop %v1010
      %v1028 = vtanh.pop %v1013
      %v1029 = vtanh.pop %v1015
      %v1030 = vtanh.pop %v1018
      %v1031 = vtanh.pop %v1020
      %v1032 = vxor.u32 %v998, 2147483648
      %v1033 = vxor.u32 %v1000, 2147483648
      %v1034 = vxor.u32 %v1003, 2147483648
      %v1035 = vxor.u32 %v1005, 2147483648
      %v1036 = vxor.u32 %v1008, 2147483648
      %v1037 = vxor.u32 %v1010, 2147483648
      %v1038 = vxor.u32 %v1013, 2147483648
      %v1039 = vxor.u32 %v1015, 2147483648
      %v1040 = vxor.u32 %v1018, 2147483648
      %v1041 = vxor.u32 %v1020, 2147483648
      %v1042 = vmul.f32 %v1032, 1.442695
      %v1043 = vpow.pop %v1042
      %v1044 = vmul.f32 %v1033, 1.442695
      %v1045 = vpow.pop %v1044
      %v1046 = vmul.f32 %v1034, 1.442695
      %v1047 = vpow.pop %v1046
      %v1048 = vmul.f32 %v1035, 1.442695
      %v1049 = vpow.pop %v1048
      %v1050 = vmul.f32 %v1036, 1.442695
      %v1051 = vpow.pop %v1050
      %v1052 = vmul.f32 %v1037, 1.442695
      %v1053 = vpow.pop %v1052
      %v1054 = vmul.f32 %v1038, 1.442695
      %v1055 = vpow.pop %v1054
      %v1056 = vmul.f32 %v1039, 1.442695
      %v1057 = vpow.pop %v1056
      %v1058 = vmul.f32 %v1040, 1.442695
      %v1059 = vpow.pop %v1058
      %v1060 = vmul.f32 %v1041, 1.442695
      %v1061 = vpow.pop %v1060
      %v1062 = vadd.f32 %v1043, 1.0
      %v1063 = vadd.f32 %v1045, 1.0
      %v1064 = vadd.f32 %v1047, 1.0
      %v1065 = vadd.f32 %v1049, 1.0
      %v1066 = vadd.f32 %v1051, 1.0
      %v1067 = vadd.f32 %v1053, 1.0
      %v1068 = vadd.f32 %v1055, 1.0
      %v1069 = vadd.f32 %v1057, 1.0
      %v1070 = vadd.f32 %v1059, 1.0
      %v1071 = vadd.f32 %v1061, 1.0
      %v1072 = vrcp.pop %v1062
      %v1073 = vmul.f32 %v1062, %v1072
      %v1074 = vsub.f32 1.0, %v1073
      %v1075 = vmul.f32 %v1072, %v1074
      %v1076 = vadd.f32 %v1072, %v1075
      %vm1077 = vweird.f32 %v1062
      %vm1078 = vweird.f32 %v1072
      %vm1079 = vmor %vm1077, %vm1078
      %v1080 = vsel %vm1079, %v1072, %v1076
      %v1081 = vand.u32 2147483647, %v1062
      %vm1082 = vcmp.eq.f32.partialorder %v1081, 8.507059e+37
      %v1083 = vand.u32 %v1062, 2147483648
      %v1084 = vor.u32 1.1754944e-38, %v1083
      %v1085 = vsel %vm1082, %v1084, %v1080
      %v1086 = vmul.f32 1.0, %v1085
      %v1087 = vrcp.pop %v1063
      %v1088 = vmul.f32 %v1063, %v1087
      %v1089 = vsub.f32 1.0, %v1088
      %v1090 = vmul.f32 %v1087, %v1089
      %v1091 = vadd.f32 %v1087, %v1090
      %vm1092 = vweird.f32 %v1063
      %vm1093 = vweird.f32 %v1087
      %vm1094 = vmor %vm1092, %vm1093
      %v1095 = vsel %vm1094, %v1087, %v1091
      %v1096 = vand.u32 2147483647, %v1063
      %vm1097 = vcmp.eq.f32.partialorder %v1096, 8.507059e+37
      %v1098 = vand.u32 %v1063, 2147483648
      %v1099 = vor.u32 1.1754944e-38, %v1098
      %v1100 = vsel %vm1097, %v1099, %v1095
      %v1101 = vmul.f32 1.0, %v1100
      %v1102 = vrcp.pop %v1064
      %v1103 = vmul.f32 %v1064, %v1102
      %v1104 = vsub.f32 1.0, %v1103
      %v1105 = vmul.f32 %v1102, %v1104
      %v1106 = vadd.f32 %v1102, %v1105
      %vm1107 = vweird.f32 %v1064
      %vm1108 = vweird.f32 %v1102
      %vm1109 = vmor %vm1107, %vm1108
      %v1110 = vsel %vm1109, %v1102, %v1106
      %v1111 = vand.u32 2147483647, %v1064
      %vm1112 = vcmp.eq.f32.partialorder %v1111, 8.507059e+37
      %v1113 = vand.u32 %v1064, 2147483648
      %v1114 = vor.u32 1.1754944e-38, %v1113
      %v1115 = vsel %vm1112, %v1114, %v1110
      %v1116 = vmul.f32 1.0, %v1115
      %v1117 = vrcp.pop %v1065
      %v1118 = vmul.f32 %v1065, %v1117
      %v1119 = vsub.f32 1.0, %v1118
      %v1120 = vmul.f32 %v1117, %v1119
      %v1121 = vadd.f32 %v1117, %v1120
      %vm1122 = vweird.f32 %v1065
      %vm1123 = vweird.f32 %v1117
      %vm1124 = vmor %vm1122, %vm1123
      %v1125 = vsel %vm1124, %v1117, %v1121
      %v1126 = vand.u32 2147483647, %v1065
      %vm1127 = vcmp.eq.f32.partialorder %v1126, 8.507059e+37
      %v1128 = vand.u32 %v1065, 2147483648
      %v1129 = vor.u32 1.1754944e-38, %v1128
      %v1130 = vsel %vm1127, %v1129, %v1125
      %v1131 = vmul.f32 1.0, %v1130
      %v1132 = vrcp.pop %v1066
      %v1133 = vmul.f32 %v1066, %v1132
      %v1134 = vsub.f32 1.0, %v1133
      %v1135 = vmul.f32 %v1132, %v1134
      %v1136 = vadd.f32 %v1132, %v1135
      %vm1137 = vweird.f32 %v1066
      %vm1138 = vweird.f32 %v1132
      %vm1139 = vmor %vm1137, %vm1138
      %v1140 = vsel %vm1139, %v1132, %v1136
      %v1141 = vand.u32 2147483647, %v1066
      %vm1142 = vcmp.eq.f32.partialorder %v1141, 8.507059e+37
      %v1143 = vand.u32 %v1066, 2147483648
      %v1144 = vor.u32 1.1754944e-38, %v1143
      %v1145 = vsel %vm1142, %v1144, %v1140
      %v1146 = vmul.f32 1.0, %v1145
      %v1147 = vrcp.pop %v1067
      %v1148 = vmul.f32 %v1067, %v1147
      %v1149 = vsub.f32 1.0, %v1148
      %v1150 = vmul.f32 %v1147, %v1149
      %v1151 = vadd.f32 %v1147, %v1150
      %vm1152 = vweird.f32 %v1067
      %vm1153 = vweird.f32 %v1147
      %vm1154 = vmor %vm1152, %vm1153
      %v1155 = vsel %vm1154, %v1147, %v1151
      %v1156 = vand.u32 2147483647, %v1067
      %vm1157 = vcmp.eq.f32.partialorder %v1156, 8.507059e+37
      %v1158 = vand.u32 %v1067, 2147483648
      %v1159 = vor.u32 1.1754944e-38, %v1158
      %v1160 = vsel %vm1157, %v1159, %v1155
      %v1161 = vmul.f32 1.0, %v1160
      %v1162 = vrcp.pop %v1068
      %v1163 = vmul.f32 %v1068, %v1162
      %v1164 = vsub.f32 1.0, %v1163
      %v1165 = vmul.f32 %v1162, %v1164
      %v1166 = vadd.f32 %v1162, %v1165
      %vm1167 = vweird.f32 %v1068
      %vm1168 = vweird.f32 %v1162
      %vm1169 = vmor %vm1167, %vm1168
      %v1170 = vsel %vm1169, %v1162, %v1166
      %v1171 = vand.u32 2147483647, %v1068
      %vm1172 = vcmp.eq.f32.partialorder %v1171, 8.507059e+37
      %v1173 = vand.u32 %v1068, 2147483648
      %v1174 = vor.u32 1.1754944e-38, %v1173
      %v1175 = vsel %vm1172, %v1174, %v1170
      %v1176 = vmul.f32 1.0, %v1175
      %v1177 = vrcp.pop %v1069
      %v1178 = vmul.f32 %v1069, %v1177
      %v1179 = vsub.f32 1.0, %v1178
      %v1180 = vmul.f32 %v1177, %v1179
      %v1181 = vadd.f32 %v1177, %v1180
      %vm1182 = vweird.f32 %v1069
      %vm1183 = vweird.f32 %v1177
      %vm1184 = vmor %vm1182, %vm1183
      %v1185 = vsel %vm1184, %v1177, %v1181
      %v1186 = vand.u32 2147483647, %v1069
      %vm1187 = vcmp.eq.f32.partialorder %v1186, 8.507059e+37
      %v1188 = vand.u32 %v1069, 2147483648
      %v1189 = vor.u32 1.1754944e-38, %v1188
      %v1190 = vsel %vm1187, %v1189, %v1185
      %v1191 = vmul.f32 1.0, %v1190
      %v1192 = vrcp.pop %v1070
      %v1193 = vmul.f32 %v1070, %v1192
      %v1194 = vsub.f32 1.0, %v1193
      %v1195 = vmul.f32 %v1192, %v1194
      %v1196 = vadd.f32 %v1192, %v1195
      %vm1197 = vweird.f32 %v1070
      %vm1198 = vweird.f32 %v1192
      %vm1199 = vmor %vm1197, %vm1198
      %v1200 = vsel %vm1199, %v1192, %v1196
      %v1201 = vand.u32 2147483647, %v1070
      %vm1202 = vcmp.eq.f32.partialorder %v1201, 8.507059e+37
      %v1203 = vand.u32 %v1070, 2147483648
      %v1204 = vor.u32 1.1754944e-38, %v1203
      %v1205 = vsel %vm1202, %v1204, %v1200
      %v1206 = vmul.f32 1.0, %v1205
      %v1207 = vrcp.pop %v1071
      %v1208 = vmul.f32 %v1071, %v1207
      %v1209 = vsub.f32 1.0, %v1208
      %v1210 = vmul.f32 %v1207, %v1209
      %v1211 = vadd.f32 %v1207, %v1210
      %vm1212 = vweird.f32 %v1071
      %vm1213 = vweird.f32 %v1207
      %vm1214 = vmor %vm1212, %vm1213
      %v1215 = vsel %vm1214, %v1207, %v1211
      %v1216 = vand.u32 2147483647, %v1071
      %vm1217 = vcmp.eq.f32.partialorder %v1216, 8.507059e+37
      %v1218 = vand.u32 %v1071, 2147483648
      %v1219 = vor.u32 1.1754944e-38, %v1218
      %v1220 = vsel %vm1217, %v1219, %v1215
      %v1221 = vmul.f32 1.0, %v1220
      %1232 = vrot.lane.b32.xlu0 %v1086, 96
      %v1233 = vpop.permute.xlu0 %1232
      %1234 = vrot.lane.b32.xlu0 %v1101, 96
      %v1235 = vpop.permute.xlu0 %1234
      %1236 = vrot.lane.b32.xlu0 %v1116, 96
      %v1237 = vpop.permute.xlu0 %1236
      %1238 = vrot.lane.b32.xlu0 %v1131, 96
      %v1239 = vpop.permute.xlu0 %1238
      %1240 = vrot.lane.b32.xlu0 %v1146, 96
      %v1241 = vpop.permute.xlu0 %1240
      %1242 = vrot.lane.b32.xlu0 %v1161, 96
      %v1243 = vpop.permute.xlu0 %1242
      %1244 = vrot.lane.b32.xlu0 %v1176, 96
      %v1245 = vpop.permute.xlu0 %1244
      %1246 = vrot.lane.b32.xlu0 %v1191, 96
      %v1247 = vpop.permute.xlu0 %1246
      %1248 = vrot.lane.b32.xlu0 %v1206, 96
      %v1249 = vpop.permute.xlu0 %1248
      %1250 = vrot.lane.b32.xlu0 %v1221, 96
      %v1251 = vpop.permute.xlu0 %1250
      %v1262 = vmul.f32 %v1022, %v1233
      %v1263 = vmul.f32 %v1023, %v1235
      %v1264 = vmul.f32 %v1024, %v1237
      %v1265 = vmul.f32 %v1025, %v1239
      %v1266 = vmul.f32 %v1026, %v1241
      %v1267 = vmul.f32 %v1027, %v1243
      %v1268 = vmul.f32 %v1028, %v1245
      %v1269 = vmul.f32 %v1029, %v1247
      %v1270 = vmul.f32 %v1030, %v1249
      %v1271 = vmul.f32 %v1031, %v1251
      %v1272 = vpack.c.bf16 %v1262, %v1262
      %v1273 = vpack.c.bf16 %v1263, %v1263
      %v1274 = vpack.c.bf16 %v1264, %v1264
      %v1275 = vpack.c.bf16 %v1265, %v1265
      %v1276 = vpack.c.bf16 %v1266, %v1266
      %v1277 = vpack.c.bf16 %v1267, %v1267
      %v1278 = vpack.c.bf16 %v1268, %v1268
      %v1279 = vpack.c.bf16 %v1269, %v1269
      %v1280 = vpack.c.bf16 %v1270, %v1270
      %v1281 = vpack.c.bf16 %v1271, %v1271
      %v1282 = vld [vmem:[%s1] sm:$0xf]
      %v1283 = vld [vmem:[%s2] sm:$0xf]
      %vm1284 = vcmask 64512
      %v1286 = vsel %vm1284, %v1282, 0
      %vm1288 = vcmask 1043456
      %v1290 = vsel %vm1288, %v1272, 0
      %1292 = vmatpush.bf16.msra.mxu0 0
      %1293 = vmatpush.bf16.msra.mxu0 0
      %1294 = vmatpush.bf16.msra.mxu0 0
      %1295 = vmatpush.bf16.msra.mxu0 0
      %1296 = vmatpush.bf16.msra.mxu0 0
      %1297 = vmatpush.bf16.msra.mxu0 0
      %1298 = vmatpush.bf16.msra.mxu0 0
      %1299 = vmatpush.bf16.msra.mxu0 %v1290
      %1300 = vmatmul.bf16.gmra.mxu0 %v1286
      %v1301 = vpop.f32.mrf.mxu0
      %v1302 = vadd.f32 0.0, %v1301
      %v1303 = vpop.f32.mrf.mxu0
      %1304 = vdwg.mxu0
      %v1306 = vsel %vm1288, %v1273, 0
      %1308 = vmatpush.bf16.msra.mxu0 0
      %1309 = vmatpush.bf16.msra.mxu0 0
      %1310 = vmatpush.bf16.msra.mxu0 0
      %1311 = vmatpush.bf16.msra.mxu0 0
      %1312 = vmatpush.bf16.msra.mxu0 0
      %1313 = vmatpush.bf16.msra.mxu0 0
      %1314 = vmatpush.bf16.msra.mxu0 0
      %1315 = vmatpush.bf16.msra.mxu0 %v1306
      %1316 = vmatmul.bf16.gmra.mxu0 %v1286
      %v1317 = vpop.f32.mrf.mxu0
      %v1318 = vadd.f32 0.0, %v1317
      %v1319 = vpop.f32.mrf.mxu0
      %1320 = vdwg.mxu0
      %v1322 = vsel %vm1288, %v1274, 0
      %1324 = vmatpush.bf16.msra.mxu0 0
      %1325 = vmatpush.bf16.msra.mxu0 0
      %1326 = vmatpush.bf16.msra.mxu0 0
      %1327 = vmatpush.bf16.msra.mxu0 0
      %1328 = vmatpush.bf16.msra.mxu0 0
      %1329 = vmatpush.bf16.msra.mxu0 0
      %1330 = vmatpush.bf16.msra.mxu0 0
      %1331 = vmatpush.bf16.msra.mxu0 %v1322
      %1332 = vmatmul.bf16.gmra.mxu0 %v1286
      %v1333 = vpop.f32.mrf.mxu0
      %v1334 = vadd.f32 0.0, %v1333
      %v1335 = vpop.f32.mrf.mxu0
      %1336 = vdwg.mxu0
      %v1338 = vsel %vm1288, %v1275, 0
      %1340 = vmatpush.bf16.msra.mxu0 0
      %1341 = vmatpush.bf16.msra.mxu0 0
      %1342 = vmatpush.bf16.msra.mxu0 0
      %1343 = vmatpush.bf16.msra.mxu0 0
      %1344 = vmatpush.bf16.msra.mxu0 0
      %1345 = vmatpush.bf16.msra.mxu0 0
      %1346 = vmatpush.bf16.msra.mxu0 0
      %1347 = vmatpush.bf16.msra.mxu0 %v1338
      %1348 = vmatmul.bf16.gmra.mxu0 %v1286
      %v1349 = vpop.f32.mrf.mxu0
      %v1350 = vadd.f32 0.0, %v1349
      %v1351 = vpop.f32.mrf.mxu0
      %1352 = vdwg.mxu0
      %v1354 = vsel %vm1288, %v1276, 0
      %1356 = vmatpush.bf16.msra.mxu0 0
      %1357 = vmatpush.bf16.msra.mxu0 0
      %1358 = vmatpush.bf16.msra.mxu0 0
      %1359 = vmatpush.bf16.msra.mxu0 0
      %1360 = vmatpush.bf16.msra.mxu0 0
      %1361 = vmatpush.bf16.msra.mxu0 0
      %1362 = vmatpush.bf16.msra.mxu0 0
      %1363 = vmatpush.bf16.msra.mxu0 %v1354
      %1364 = vmatmul.bf16.gmra.mxu0 %v1286
      %v1365 = vpop.f32.mrf.mxu0
      %v1366 = vadd.f32 0.0, %v1365
      %v1367 = vpop.f32.mrf.mxu0
      %1368 = vdwg.mxu0
      %v1370 = vsel %vm1288, %v1277, 0
      %1372 = vmatpush.bf16.msra.mxu0 0
      %1373 = vmatpush.bf16.msra.mxu0 0
      %1374 = vmatpush.bf16.msra.mxu0 0
      %1375 = vmatpush.bf16.msra.mxu0 0
      %1376 = vmatpush.bf16.msra.mxu0 0
      %1377 = vmatpush.bf16.msra.mxu0 0
      %1378 = vmatpush.bf16.msra.mxu0 0
      %1379 = vmatpush.bf16.msra.mxu0 %v1370
      %1380 = vmatmul.bf16.gmra.mxu0 %v1286
      %v1381 = vpop.f32.mrf.mxu0
      %v1382 = vadd.f32 0.0, %v1381
      %v1383 = vpop.f32.mrf.mxu0
      %1384 = vdwg.mxu0
      %v1386 = vsel %vm1288, %v1278, 0
      %1388 = vmatpush.bf16.msra.mxu0 0
      %1389 = vmatpush.bf16.msra.mxu0 0
      %1390 = vmatpush.bf16.msra.mxu0 0
      %1391 = vmatpush.bf16.msra.mxu0 0
      %1392 = vmatpush.bf16.msra.mxu0 0
      %1393 = vmatpush.bf16.msra.mxu0 0
      %1394 = vmatpush.bf16.msra.mxu0 0
      %1395 = vmatpush.bf16.msra.mxu0 %v1386
      %1396 = vmatmul.bf16.gmra.mxu0 %v1286
      %v1397 = vpop.f32.mrf.mxu0
      %v1398 = vadd.f32 0.0, %v1397
      %v1399 = vpop.f32.mrf.mxu0
      %1400 = vdwg.mxu0
      %v1402 = vsel %vm1288, %v1279, 0
      %1404 = vmatpush.bf16.msra.mxu0 0
      %1405 = vmatpush.bf16.msra.mxu0 0
      %1406 = vmatpush.bf16.msra.mxu0 0
      %1407 = vmatpush.bf16.msra.mxu0 0
      %1408 = vmatpush.bf16.msra.mxu0 0
      %1409 = vmatpush.bf16.msra.mxu0 0
      %1410 = vmatpush.bf16.msra.mxu0 0
      %1411 = vmatpush.bf16.msra.mxu0 %v1402
      %1412 = vmatmul.bf16.gmra.mxu0 %v1286
      %v1413 = vpop.f32.mrf.mxu0
      %v1414 = vadd.f32 0.0, %v1413
      %v1415 = vpop.f32.mrf.mxu0
      %1416 = vdwg.mxu0
      %v1418 = vsel %vm1288, %v1280, 0
      %1420 = vmatpush.bf16.msra.mxu0 0
      %1421 = vmatpush.bf16.msra.mxu0 0
      %1422 = vmatpush.bf16.msra.mxu0 0
      %1423 = vmatpush.bf16.msra.mxu0 0
      %1424 = vmatpush.bf16.msra.mxu0 0
      %1425 = vmatpush.bf16.msra.mxu0 0
      %1426 = vmatpush.bf16.msra.mxu0 0
      %1427 = vmatpush.bf16.msra.mxu0 %v1418
      %1428 = vmatmul.bf16.gmra.mxu0 %v1286
      %v1429 = vpop.f32.mrf.mxu0
      %v1430 = vadd.f32 0.0, %v1429
      %v1431 = vpop.f32.mrf.mxu0
      %1432 = vdwg.mxu0
      %v1434 = vsel %vm1288, %v1281, 0
      %1436 = vmatpush.bf16.msra.mxu0 0
      %1437 = vmatpush.bf16.msra.mxu0 0
      %1438 = vmatpush.bf16.msra.mxu0 0
      %1439 = vmatpush.bf16.msra.mxu0 0
      %1440 = vmatpush.bf16.msra.mxu0 0
      %1441 = vmatpush.bf16.msra.mxu0 0
      %1442 = vmatpush.bf16.msra.mxu0 0
      %1443 = vmatpush.bf16.msra.mxu0 %v1434
      %1444 = vmatmul.bf16.gmra.mxu0 %v1286
      %v1445 = vpop.f32.mrf.mxu0
      %v1446 = vadd.f32 0.0, %v1445
      %v1447 = vpop.f32.mrf.mxu0
      %1448 = vdwg.mxu0
      %v1450 = vsel %vm1284, %v1283, 0
      %1452 = vmatpush.bf16.msra.mxu0 0
      %1453 = vmatpush.bf16.msra.mxu0 0
      %1454 = vmatpush.bf16.msra.mxu0 0
      %1455 = vmatpush.bf16.msra.mxu0 0
      %1456 = vmatpush.bf16.msra.mxu0 0
      %1457 = vmatpush.bf16.msra.mxu0 0
      %1458 = vmatpush.bf16.msra.mxu0 0
      %1459 = vmatpush.bf16.msra.mxu0 %v1290
      %1460 = vmatmul.bf16.gmra.mxu0 %v1450
      %v1461 = vpop.f32.mrf.mxu0
      %v1462 = vadd.f32 0.0, %v1461
      %v1463 = vpop.f32.mrf.mxu0
      %1464 = vdwg.mxu0
      %1465 = vmatpush.bf16.msra.mxu0 0
      %1466 = vmatpush.bf16.msra.mxu0 0
      %1467 = vmatpush.bf16.msra.mxu0 0
      %1468 = vmatpush.bf16.msra.mxu0 0
      %1469 = vmatpush.bf16.msra.mxu0 0
      %1470 = vmatpush.bf16.msra.mxu0 0
      %1471 = vmatpush.bf16.msra.mxu0 0
      %1472 = vmatpush.bf16.msra.mxu0 %v1306
      %1473 = vmatmul.bf16.gmra.mxu0 %v1450
      %v1474 = vpop.f32.mrf.mxu0
      %v1475 = vadd.f32 0.0, %v1474
      %v1476 = vpop.f32.mrf.mxu0
      %1477 = vdwg.mxu0
      %1478 = vmatpush.bf16.msra.mxu0 0
      %1479 = vmatpush.bf16.msra.mxu0 0
      %1480 = vmatpush.bf16.msra.mxu0 0
      %1481 = vmatpush.bf16.msra.mxu0 0
      %1482 = vmatpush.bf16.msra.mxu0 0
      %1483 = vmatpush.bf16.msra.mxu0 0
      %1484 = vmatpush.bf16.msra.mxu0 0
      %1485 = vmatpush.bf16.msra.mxu0 %v1322
      %1486 = vmatmul.bf16.gmra.mxu0 %v1450
      %v1487 = vpop.f32.mrf.mxu0
      %v1488 = vadd.f32 0.0, %v1487
      %v1489 = vpop.f32.mrf.mxu0
      %1490 = vdwg.mxu0
      %1491 = vmatpush.bf16.msra.mxu0 0
      %1492 = vmatpush.bf16.msra.mxu0 0
      %1493 = vmatpush.bf16.msra.mxu0 0
      %1494 = vmatpush.bf16.msra.mxu0 0
      %1495 = vmatpush.bf16.msra.mxu0 0
      %1496 = vmatpush.bf16.msra.mxu0 0
      %1497 = vmatpush.bf16.msra.mxu0 0
      %1498 = vmatpush.bf16.msra.mxu0 %v1338
      %1499 = vmatmul.bf16.gmra.mxu0 %v1450
      %v1500 = vpop.f32.mrf.mxu0
      %v1501 = vadd.f32 0.0, %v1500
      %v1502 = vpop.f32.mrf.mxu0
      %1503 = vdwg.mxu0
      %1504 = vmatpush.bf16.msra.mxu0 0
      %1505 = vmatpush.bf16.msra.mxu0 0
      %1506 = vmatpush.bf16.msra.mxu0 0
      %1507 = vmatpush.bf16.msra.mxu0 0
      %1508 = vmatpush.bf16.msra.mxu0 0
      %1509 = vmatpush.bf16.msra.mxu0 0
      %1510 = vmatpush.bf16.msra.mxu0 0
      %1511 = vmatpush.bf16.msra.mxu0 %v1354
      %1512 = vmatmul.bf16.gmra.mxu0 %v1450
      %v1513 = vpop.f32.mrf.mxu0
      %v1514 = vadd.f32 0.0, %v1513
      %v1515 = vpop.f32.mrf.mxu0
      %1516 = vdwg.mxu0
      %1517 = vmatpush.bf16.msra.mxu0 0
      %1518 = vmatpush.bf16.msra.mxu0 0
      %1519 = vmatpush.bf16.msra.mxu0 0
      %1520 = vmatpush.bf16.msra.mxu0 0
      %1521 = vmatpush.bf16.msra.mxu0 0
      %1522 = vmatpush.bf16.msra.mxu0 0
      %1523 = vmatpush.bf16.msra.mxu0 0
      %1524 = vmatpush.bf16.msra.mxu0 %v1370
      %1525 = vmatmul.bf16.gmra.mxu0 %v1450
      %v1526 = vpop.f32.mrf.mxu0
      %v1527 = vadd.f32 0.0, %v1526
      %v1528 = vpop.f32.mrf.mxu0
      %1529 = vdwg.mxu0
      %1530 = vmatpush.bf16.msra.mxu0 0
      %1531 = vmatpush.bf16.msra.mxu0 0
      %1532 = vmatpush.bf16.msra.mxu0 0
      %1533 = vmatpush.bf16.msra.mxu0 0
      %1534 = vmatpush.bf16.msra.mxu0 0
      %1535 = vmatpush.bf16.msra.mxu0 0
      %1536 = vmatpush.bf16.msra.mxu0 0
      %1537 = vmatpush.bf16.msra.mxu0 %v1386
      %1538 = vmatmul.bf16.gmra.mxu0 %v1450
      %v1539 = vpop.f32.mrf.mxu0
      %v1540 = vadd.f32 0.0, %v1539
      %v1541 = vpop.f32.mrf.mxu0
      %1542 = vdwg.mxu0
      %1543 = vmatpush.bf16.msra.mxu0 0
      %1544 = vmatpush.bf16.msra.mxu0 0
      %1545 = vmatpush.bf16.msra.mxu0 0
      %1546 = vmatpush.bf16.msra.mxu0 0
      %1547 = vmatpush.bf16.msra.mxu0 0
      %1548 = vmatpush.bf16.msra.mxu0 0
      %1549 = vmatpush.bf16.msra.mxu0 0
      %1550 = vmatpush.bf16.msra.mxu0 %v1402
      %1551 = vmatmul.bf16.gmra.mxu0 %v1450
      %v1552 = vpop.f32.mrf.mxu0
      %v1553 = vadd.f32 0.0, %v1552
      %v1554 = vpop.f32.mrf.mxu0
      %1555 = vdwg.mxu0
      %1556 = vmatpush.bf16.msra.mxu0 0
      %1557 = vmatpush.bf16.msra.mxu0 0
      %1558 = vmatpush.bf16.msra.mxu0 0
      %1559 = vmatpush.bf16.msra.mxu0 0
      %1560 = vmatpush.bf16.msra.mxu0 0
      %1561 = vmatpush.bf16.msra.mxu0 0
      %1562 = vmatpush.bf16.msra.mxu0 0
      %1563 = vmatpush.bf16.msra.mxu0 %v1418
      %1564 = vmatmul.bf16.gmra.mxu0 %v1450
      %v1565 = vpop.f32.mrf.mxu0
      %v1566 = vadd.f32 0.0, %v1565
      %v1567 = vpop.f32.mrf.mxu0
      %1568 = vdwg.mxu0
      %1569 = vmatpush.bf16.msra.mxu0 0
      %1570 = vmatpush.bf16.msra.mxu0 0
      %1571 = vmatpush.bf16.msra.mxu0 0
      %1572 = vmatpush.bf16.msra.mxu0 0
      %1573 = vmatpush.bf16.msra.mxu0 0
      %1574 = vmatpush.bf16.msra.mxu0 0
      %1575 = vmatpush.bf16.msra.mxu0 0
      %1576 = vmatpush.bf16.msra.mxu0 %v1434
      %1577 = vmatmul.bf16.gmra.mxu0 %v1450
      %v1578 = vpop.f32.mrf.mxu0
      %v1579 = vadd.f32 0.0, %v1578
      %v1580 = vpop.f32.mrf.mxu0
      %1581 = vdwg.mxu0
      %1592 = vrot.lane.b32.xlu0 %v1462, 32
      %v1593 = vpop.permute.xlu0 %1592
      %1594 = vrot.lane.b32.xlu0 %v1475, 32
      %v1595 = vpop.permute.xlu0 %1594
      %1596 = vrot.lane.b32.xlu0 %v1488, 32
      %v1597 = vpop.permute.xlu0 %1596
      %1598 = vrot.lane.b32.xlu0 %v1501, 32
      %v1599 = vpop.permute.xlu0 %1598
      %1600 = vrot.lane.b32.xlu0 %v1514, 32
      %v1601 = vpop.permute.xlu0 %1600
      %1602 = vrot.lane.b32.xlu0 %v1527, 32
      %v1603 = vpop.permute.xlu0 %1602
      %1604 = vrot.lane.b32.xlu0 %v1540, 32
      %v1605 = vpop.permute.xlu0 %1604
      %1606 = vrot.lane.b32.xlu0 %v1553, 32
      %v1607 = vpop.permute.xlu0 %1606
      %1608 = vrot.lane.b32.xlu0 %v1566, 32
      %v1609 = vpop.permute.xlu0 %1608
      %1610 = vrot.lane.b32.xlu0 %v1579, 32
      %v1611 = vpop.permute.xlu0 %1610
      %v1622 = vsel %vm772, %v1302, %v1593
      %v1623 = vsel %vm772, %v1318, %v1595
      %v1624 = vsel %vm772, %v1334, %v1597
      %v1625 = vsel %vm772, %v1350, %v1599
      %v1626 = vsel %vm772, %v1366, %v1601
      %v1627 = vsel %vm772, %v1382, %v1603
      %v1628 = vsel %vm772, %v1398, %v1605
      %v1629 = vsel %vm772, %v1414, %v1607
      %v1630 = vsel %vm772, %v1430, %v1609
      %v1631 = vsel %vm772, %v1446, %v1611
      %v1632 = vpack.c.bf16 %v1623, %v1622
      %v1633 = vpack.c.bf16 %v1625, %v1624
      %v1634 = vpack.c.bf16 %v1627, %v1626
      %v1635 = vpack.c.bf16 %v1629, %v1628
      %v1636 = vpack.c.bf16 %v1631, %v1630
      %v1637 = vld [vmem:[%s7] sm:$0xf]
      %v1638 = vld [vmem:[%s7 + $0x4] sm:$0xf]
      %v1639 = vld [vmem:[%s7 + $0x8] sm:$0xf]
      %v1640 = vld [vmem:[%s7 + $0xc] sm:$0xf]
      %v1641 = vld [vmem:[%s7 + $0x10] sm:$0xf]
      %v1642 = vld [vmem:[%s7 + $0x14] sm:$0xf]
      %v1643 = vld [vmem:[%s7 + $0x18] sm:$0xf]
      %v1644 = vld [vmem:[%s7 + $0x1c] sm:$0xf]
      %v1645 = vld [vmem:[%s8] sm:$0x1]
      %v1647 = vperm.slane %v1645, 0
      %v1657 = vunpack.c.l.b16 %v1637
      %v1658 = vunpack.c.l.b16 %v1638
      %v1659 = vunpack.c.l.b16 %v1639
      %v1660 = vunpack.c.l.b16 %v1640
      %v1661 = vunpack.c.l.b16 %v1641
      %v1662 = vunpack.c.l.b16 %v1642
      %v1663 = vunpack.c.l.b16 %v1643
      %v1664 = vunpack.c.l.b16 %v1644
      %v1665 = vpack.c.b16 %v1658, %v1657
      %v1666 = vpack.c.b16 %v1660, %v1659
      %v1667 = vpack.c.b16 %v1662, %v1661
      %v1668 = vpack.c.b16 %v1664, %v1663
      %v1674 = vsel %vm783, %v1632, 0
      %v1677 = vsel %vm783, %v1633, 0
      %v1680 = vsel %vm783, %v1634, 0
      %v1683 = vsel %vm783, %v1635, 0
      %v1686 = vsel %vm783, %v1636, 0
      %1688 = vmatpush.bf16.msra.mxu0 0
      %1689 = vmatpush.bf16.msra.mxu0 0
      %1690 = vmatpush.bf16.msra.mxu0 0
      %1691 = vmatpush.bf16.msra.mxu0 0
      %1692 = vmatpush.bf16.msra.mxu0 %v1668
      %1693 = vmatpush.bf16.msra.mxu0 %v1667
      %1694 = vmatpush.bf16.msra.mxu0 %v1666
      %1695 = vmatpush.bf16.msra.mxu0 %v1665
      %1696 = vmatmul.bf16.gmra.mxu0 %v1674
      %v1697 = vpop.f32.mrf.mxu0
      %v1698 = vpop.f32.mrf.mxu0
      %1699 = vmatmul.bf16.gmra.mxu0 %v1677
      %v1700 = vpop.f32.mrf.mxu0
      %v1701 = vpop.f32.mrf.mxu0
      %1702 = vmatmul.bf16.gmra.mxu0 %v1680
      %v1703 = vpop.f32.mrf.mxu0
      %v1704 = vpop.f32.mrf.mxu0
      %1705 = vmatmul.bf16.gmra.mxu0 %v1683
      %v1706 = vpop.f32.mrf.mxu0
      %v1707 = vadd.f32 %v1647, %v1706
      %v1708 = vpop.f32.mrf.mxu0
      %v1709 = vadd.f32 %v1647, %v1708
      %1710 = vmatmul.bf16.gmra.mxu0 %v1686
      %v1711 = vpop.f32.mrf.mxu0
      %v1712 = vadd.f32 %v1647, %v1711
      %v1713 = vpop.f32.mrf.mxu0
      %v1714 = vadd.f32 %v1647, %v1713
      %1715 = vdwg.mxu0
      %v1716 = vsel %vm772, %v1707, 0.0
      %1717 = vadd.xlane.f32.xlu0 %v1716
      %v1718 = vpop.xlane.xlu0 %1717
      %v1719 = vsel %vm772, %v1709, 0.0
      %1720 = vadd.xlane.f32.xlu0 %v1719
      %v1721 = vpop.xlane.xlu0 %1720
      %v1722 = vsel %vm772, %v1712, 0.0
      %1723 = vadd.xlane.f32.xlu0 %v1722
      %v1724 = vpop.xlane.xlu0 %1723
      %v1725 = vsel %vm772, %v1714, 0.0
      %1726 = vadd.xlane.f32.xlu0 %v1725
      %v1727 = vpop.xlane.xlu0 %1726
      %v1728 = vadd.f32 %v1718, %v1721
      %v1729 = vadd.f32 %v1728, %v1724
      %v1730 = vadd.f32 %v1729, %v1727
      %v1731 = vrot.slane %v1730, 4
      %v1732 = vadd.f32 %v1730, %v1731
      %v1733 = vrot.slane %v1732, 2
      %v1734 = vadd.f32 %v1732, %v1733
      %v1735 = vrot.slane %v1734, 1
      %v1736 = vadd.f32 %v1734, %v1735
      %v1737 = vrcp.pop 1024.0
      %v1738 = vmul.f32 1024.0, %v1737
      %v1739 = vsub.f32 1.0, %v1738
      %v1740 = vmul.f32 %v1737, %v1739
      %v1741 = vadd.f32 %v1737, %v1740
      %vm1742 = vweird.f32 %v1737
      %v1743 = vsel %vm1742, %v1737, %v1741
      %v1744 = vmul.f32 %v1736, %v1743
      %v1745 = vsub.f32 %v1707, %v1744
      %v1746 = vsub.f32 %v1709, %v1744
      %v1747 = vsub.f32 %v1712, %v1744
      %v1748 = vsub.f32 %v1714, %v1744
      %v1749 = vmul.f32 %v1745, %v1745
      %v1750 = vmul.f32 %v1746, %v1746
      %v1751 = vmul.f32 %v1747, %v1747
      %v1752 = vmul.f32 %v1748, %v1748
      %v1753 = vsel %vm772, %v1749, 0.0
      %1754 = vadd.xlane.f32.xlu0 %v1753
      %v1755 = vpop.xlane.xlu0 %1754
      %v1756 = vsel %vm772, %v1750, 0.0
      %1757 = vadd.xlane.f32.xlu0 %v1756
      %v1758 = vpop.xlane.xlu0 %1757
      %v1759 = vsel %vm772, %v1751, 0.0
      %1760 = vadd.xlane.f32.xlu0 %v1759
      %v1761 = vpop.xlane.xlu0 %1760
      %v1762 = vsel %vm772, %v1752, 0.0
      %1763 = vadd.xlane.f32.xlu0 %v1762
      %v1764 = vpop.xlane.xlu0 %1763
      %v1765 = vadd.f32 %v1755, %v1758
      %v1766 = vadd.f32 %v1765, %v1761
      %v1767 = vadd.f32 %v1766, %v1764
      %v1768 = vrot.slane %v1767, 4
      %v1769 = vadd.f32 %v1767, %v1768
      %v1770 = vrot.slane %v1769, 2
      %v1771 = vadd.f32 %v1769, %v1770
      %v1772 = vrot.slane %v1771, 1
      %v1773 = vadd.f32 %v1771, %v1772
      %v1774 = vmul.f32 %v1773, %v1743
      %v1775 = vadd.f32 %v1774, 1e-05
      %v1776 = vrsqrt.pop %v1775
      %v1777 = vmul.f32 %v1776, %v1775
      %v1778 = vmul.f32 %v1777, %v1776
      %v1779 = vmul.f32 0.5, %v1778
      %v1780 = vsub.f32 1.5, %v1779
      %v1781 = vmul.f32 %v1776, %v1780
      %vm1782 = vweird.f32 %v1775
      %vm1783 = vweird.f32 %v1776
      %vm1784 = vmor %vm1782, %vm1783
      %v1785 = vsel %vm1784, %v1776, %v1781
      %v1786 = vmul.f32 %v1745, %v1785
      %v1787 = vmul.f32 %v1746, %v1785
      %v1788 = vmul.f32 %v1747, %v1785
      %v1789 = vmul.f32 %v1748, %v1785
      %v1790 = vpack.c.bf16 %v1787, %v1786
      %v1791 = vpack.c.bf16 %v1789, %v1788
      %v1792 = vld [vmem:[%s9] sm:$0xf]
      %v1793 = vld [vmem:[%s9 + $0x4] sm:$0xf]
      %v1794 = vld [vmem:[%s9 + $0x8] sm:$0xf]
      %v1795 = vld [vmem:[%s9 + $0xc] sm:$0xf]
      %v1796 = vld [vmem:[%s10] sm:$0x1]
      %v1798 = vperm.slane %v1796, 0
      %v1804 = vunpack.c.l.b16 %v1792
      %v1805 = vunpack.c.l.b16 %v1793
      %v1806 = vunpack.c.l.b16 %v1794
      %v1807 = vunpack.c.l.b16 %v1795
      %v1808 = vpack.c.b16 %v1805, %v1804
      %v1809 = vpack.c.b16 %v1807, %v1806
      %v1813 = vsel %vm772, %v1790, 0
      %v1816 = vsel %vm772, %v1791, 0
      %1818 = vmatpush.bf16.msra.mxu0 0
      %1819 = vmatpush.bf16.msra.mxu0 0
      %1820 = vmatpush.bf16.msra.mxu0 0
      %1821 = vmatpush.bf16.msra.mxu0 0
      %1822 = vmatpush.bf16.msra.mxu0 0
      %1823 = vmatpush.bf16.msra.mxu0 0
      %1824 = vmatpush.bf16.msra.mxu0 %v1809
      %1825 = vmatpush.bf16.msra.mxu0 %v1808
      %1826 = vmatmul.bf16.gmra.mxu0 %v1813
      %v1827 = vpop.f32.mrf.mxu0
      %v1828 = vadd.f32 %v1798, %v1827
      %v1829 = vpop.f32.mrf.mxu0
      %v1830 = vadd.f32 %v1798, %v1829
      %1831 = vmatmul.bf16.gmra.mxu0 %v1816
      %v1832 = vpop.f32.mrf.mxu0
      %v1833 = vadd.f32 %v1798, %v1832
      %v1834 = vpop.f32.mrf.mxu0
      %v1835 = vadd.f32 %v1798, %v1834
      %1836 = vdwg.mxu0
      %v1837 = vmax.f32 %v1828, 0.0
      %v1838 = vmax.f32 %v1830, 0.0
      %v1839 = vmax.f32 %v1833, 0.0
      %v1840 = vmax.f32 %v1835, 0.0
      %v1841 = vpack.c.bf16 %v1837, %v1837
      %v1842 = vpack.c.bf16 %v1838, %v1838
      %v1843 = vpack.c.bf16 %v1839, %v1839
      %v1844 = vpack.c.bf16 %v1840, %v1840
      %v1845 = vld [vmem:[%s11] sm:$0xf]
      %v1846 = vld [vmem:[%s11 + $0x4] sm:$0xf]
      %v1847 = vld [vmem:[%s11 + $0x8] sm:$0xf]
      %v1848 = vld [vmem:[%s11 + $0xc] sm:$0xf]
      %v1849 = vld [vmem:[%s11 + $0x10] sm:$0xf]
      %v1850 = vld [vmem:[%s11 + $0x14] sm:$0xf]
      %v1851 = vld [vmem:[%s11 + $0x18] sm:$0xf]
      %v1852 = vld [vmem:[%s11 + $0x1c] sm:$0xf]
      %v1853 = vld [vmem:[%s12] sm:$0x1]
      %v1855 = vperm.slane %v1853, 0
      %v1861 = vunpack.c.l.b16 %v1841
      %v1862 = vunpack.c.l.b16 %v1842
      %v1863 = vunpack.c.l.b16 %v1843
      %v1864 = vunpack.c.l.b16 %v1844
      %v1865 = vpack.c.b16 %v1862, %v1861
      %v1866 = vpack.c.b16 %v1864, %v1863
      %v1875 = vunpack.c.l.b16 %v1845
      %v1876 = vunpack.c.l.b16 %v1846
      %v1877 = vunpack.c.l.b16 %v1847
      %v1878 = vunpack.c.l.b16 %v1848
      %v1879 = vunpack.c.l.b16 %v1849
      %v1880 = vunpack.c.l.b16 %v1850
      %v1881 = vunpack.c.l.b16 %v1851
      %v1882 = vunpack.c.l.b16 %v1852
      %v1883 = vpack.c.b16 %v1876, %v1875
      %v1884 = vpack.c.b16 %v1878, %v1877
      %v1885 = vpack.c.b16 %v1880, %v1879
      %v1886 = vpack.c.b16 %v1882, %v1881
      %v1892 = vsel %vm783, %v1865, 0
      %v1895 = vsel %vm783, %v1866, 0
      %1897 = vmatpush.bf16.msra.mxu0 0
      %1898 = vmatpush.bf16.msra.mxu0 0
      %1899 = vmatpush.bf16.msra.mxu0 0
      %1900 = vmatpush.bf16.msra.mxu0 0
      %1901 = vmatpush.bf16.msra.mxu0 %v1886
      %1902 = vmatpush.bf16.msra.mxu0 %v1885
      %1903 = vmatpush.bf16.msra.mxu0 %v1884
      %1904 = vmatpush.bf16.msra.mxu0 %v1883
      %1905 = vmatmul.bf16.gmra.mxu0 %v1892
      %v1906 = vpop.f32.mrf.mxu0
      %v1907 = vadd.f32 %v1855, %v1906
      %v1908 = vpop.f32.mrf.mxu0
      %v1909 = vadd.f32 %v1855, %v1908
      %1910 = vmatmul.bf16.gmra.mxu0 %v1895
      %v1911 = vpop.f32.mrf.mxu0
      %v1912 = vadd.f32 %v1855, %v1911
      %v1913 = vpop.f32.mrf.mxu0
      %v1914 = vadd.f32 %v1855, %v1913
      %1915 = vdwg.mxu0
      %v1916 = vld [vmem:[%s13] sm:$0xf]
      %v1917 = vld [vmem:[%s13 + $0x4] sm:$0xf]
      %v1918 = vld [vmem:[%s13 + $0x8] sm:$0xf]
      %v1919 = vld [vmem:[%s13 + $0xc] sm:$0xf]
      %v1920 = vld [vmem:[%s13 + $0x10] sm:$0xf]
      %v1921 = vld [vmem:[%s13 + $0x14] sm:$0xf]
      %v1922 = vld [vmem:[%s13 + $0x18] sm:$0xf]
      %v1923 = vld [vmem:[%s13 + $0x1c] sm:$0xf]
      %v1924 = vld [vmem:[%s14] sm:$0x1]
      %v1926 = vperm.slane %v1924, 0
      %1928 = vrot.lane.b32.xlu0 %v1865, 64
      %v1929 = vpop.permute.xlu0 %1928
      %1930 = vrot.lane.b32.xlu0 %v1866, 64
      %v1931 = vpop.permute.xlu0 %1930
      %v1940 = vunpack.c.l.b16 %v1916
      %v1941 = vunpack.c.l.b16 %v1917
      %v1942 = vunpack.c.l.b16 %v1918
      %v1943 = vunpack.c.l.b16 %v1919
      %v1944 = vunpack.c.l.b16 %v1920
      %v1945 = vunpack.c.l.b16 %v1921
      %v1946 = vunpack.c.l.b16 %v1922
      %v1947 = vunpack.c.l.b16 %v1923
      %v1948 = vpack.c.b16 %v1941, %v1940
      %v1949 = vpack.c.b16 %v1943, %v1942
      %v1950 = vpack.c.b16 %v1945, %v1944
      %v1951 = vpack.c.b16 %v1947, %v1946
      %v1957 = vsel %vm783, %v1929, 0
      %v1960 = vsel %vm783, %v1931, 0
      %1962 = vmatpush.bf16.msra.mxu0 0
      %1963 = vmatpush.bf16.msra.mxu0 0
      %1964 = vmatpush.bf16.msra.mxu0 0
      %1965 = vmatpush.bf16.msra.mxu0 0
      %1966 = vmatpush.bf16.msra.mxu0 %v1951
      %1967 = vmatpush.bf16.msra.mxu0 %v1950
      %1968 = vmatpush.bf16.msra.mxu0 %v1949
      %1969 = vmatpush.bf16.msra.mxu0 %v1948
      %1970 = vmatmul.bf16.gmra.mxu0 %v1957
      %v1971 = vpop.f32.mrf.mxu0
      %v1972 = vadd.f32 %v1926, %v1971
      %v1973 = vpop.f32.mrf.mxu0
      %v1974 = vadd.f32 %v1926, %v1973
      %1975 = vmatmul.bf16.gmra.mxu0 %v1960
      %v1976 = vpop.f32.mrf.mxu0
      %v1977 = vadd.f32 %v1926, %v1976
      %v1978 = vpop.f32.mrf.mxu0
      %v1979 = vadd.f32 %v1926, %v1978
      %1980 = vdwg.mxu0
      %1981 = vst.msk [vmem:[%s529] sm:$0xff] %vm1284, %v1907
      %1982 = vst.msk [vmem:[%s529 + $0x8] sm:$0xff] %vm1284, %v1909
      %1983 = vst.msk [vmem:[%s529 + $0x10] sm:$0xff] %vm1284, %v1912
      %1984 = vst.msk [vmem:[%s529 + $0x18] sm:$0xff] %vm1284, %v1914
      %1985 = vst.msk [vmem:[%s534] sm:$0xff] %vm1284, %v1972
      %1986 = vst.msk [vmem:[%s534 + $0x8] sm:$0xff] %vm1284, %v1974
      %1987 = vst.msk [vmem:[%s534 + $0x10] sm:$0xff] %vm1284, %v1977
      %1988 = vst.msk [vmem:[%s534 + $0x18] sm:$0xff] %vm1284, %v1979
      %p1989 = scmp.lt.s32.totalorder %s28, 1
      %s1990 = scalar_select %p1989, %s28, 1
      %s1991 = smul.addr %s1990, 4
      %s1992 = smul.addr %s1991, 8
      %s1993 = scalar_lea.vmem %s15, %s1992
      %p1994 = scmp.lt.s32.totalorder %s28, 1
      %s1995 = scalar_select %p1994, %s28, 1
      %s1996 = smul.addr %s1995, 4
      %s1997 = smul.addr %s1996, 8
      %s1998 = scalar_lea.vmem %s16, %s1997
      // Predicated region
      $region81: #{beats_block_forward.1} parent=79 // pred_check
        %p1999 = pneg %p366
      $region82: #{beats_block_forward.1} parent=79 // pred_check_branch
        %2001 = sbr.rel (%p1999) target = $region84
      $region83: #{beats_block_forward.1} parent=79 // pred_region
        _
      $region84: #{beats_block_forward.1} parent=79 // pred_fallthru
        _
      // Predicated region
      $region85: #{beats_block_forward.1} parent=79 // pred_check
        %p2002 = pneg %p392
      $region86: #{beats_block_forward.1} parent=79 // pred_check_branch
        %2004 = sbr.rel (%p2002) target = $region88
      $region87: #{beats_block_forward.1} parent=79 // pred_region
        _
      $region88: #{beats_block_forward.1} parent=79 // pred_fallthru
        _
    $region80: #{beats_block_forward.1} parent=5 // pred_fallthru
      _
    %p2005 = scmp.le.s32.totalorder 2, %s23
    // Predicated region
    $region89: #{beats_block_forward.1} parent=5 // pred_check
      %p2006 = pneg %p2005
    $region90: #{beats_block_forward.1} parent=5 // pred_check_branch
      %2008 = sbr.rel (%p2006) target = $region92
    $region91: #{beats_block_forward.1} parent=5 // pred_region
      %s2009 = ssub.s32 %s23, 2
      // Predicated region
      $region93: #{beats_block_forward.1} parent=91 // pred_check
        %p2010 = pneg %p372
      $region94: #{beats_block_forward.1} parent=91 // pred_check_branch
        %2012 = sbr.rel (%p2010) target = $region96
      $region95: #{beats_block_forward.1} parent=91 // pred_region
        %p2013 = scmp.lt.s32.totalorder %s29, 1
        %s2014 = scalar_select %p2013, %s29, 1
        %s2015 = smul.addr %s2014, 4
        %s2016 = smul.addr %s2015, 8
        %s2017 = scalar_lea.vmem %s15, %s2016
      $region96: #{beats_block_forward.1} parent=91 // pred_fallthru
        _
      // Predicated region
      $region97: #{beats_block_forward.1} parent=91 // pred_check
        %p2018 = pneg %p398
      $region98: #{beats_block_forward.1} parent=91 // pred_check_branch
        %2020 = sbr.rel (%p2018) target = $region100
      $region99: #{beats_block_forward.1} parent=91 // pred_region
        %p2021 = scmp.lt.s32.totalorder %s29, 1
        %s2022 = scalar_select %p2021, %s29, 1
        %s2023 = smul.addr %s2022, 4
        %s2024 = smul.addr %s2023, 8
        %s2025 = scalar_lea.vmem %s16, %s2024
      $region100: #{beats_block_forward.1} parent=91 // pred_fallthru
        _
    $region92: #{beats_block_forward.1} parent=5 // pred_fallthru
      _
  $region6: #{beats_block_forward.1} parent=0 // loop_footer
    %s27 = sadd.s32 1, %s23
  $region7: #{beats_block_forward.1} parent=0 // loop_footer_branch
    %22 = sbr.rel target = $region3
  $region8: #{beats_block_forward.1} parent=0 // loop_exit
    _

</llo_original>
